<compile_context>
chip_gen: v6e
topology: v6e:2x2x1
jax: 0.10.0
libtpu: 0.0.40
codegen_flags: <defaults>
</compile_context>

<pallas_src>
import jax
import jax.numpy as jnp
from jax.experimental import pallas as pl
from jax.experimental.pallas import tpu as pltpu

TAU = 1.5       # LIFNode(tau=1.5)
V_TH = 1.0      # spikingjelly default v_threshold
# v_reset = 0.0 (hard reset); detach_reset only affects backward -> no forward effect.

_LPAD = 8       # sublane-aligned left-halo offset inside the padded spike scratch


# ------------------------------------------------------------------ fused block kernel
def _make_block_kernel(Bt, H, W, C, debug):
    M = Bt * H * W

    def kernel(x_ref, w1_ref, b1_ref, w2_ref, b2_ref, *rest):
        if debug:
            out_ref, s1_ref, c1_ref, s2_ref, v1_ref, v2_ref, pad_ref = rest
        else:
            out_ref, v1_ref, v2_ref, pad_ref = rest

        t = pl.program_id(1)

        @pl.when(t == 0)
        def _():
            # Fresh LIF state per forward; zero the halo buffer once per batch tile
            # (only its interior window is overwritten afterwards, so the border stays 0).
            v1_ref[...] = jnp.zeros_like(v1_ref)
            v2_ref[...] = jnp.zeros_like(v2_ref)
            pad_ref[...] = jnp.zeros_like(pad_ref)

        def lif(v_ref, inp):
            # spikingjelly LIFNode: decay_input=True, v_reset=0, v_th=1 (f32 state/compare).
            v = v_ref[...] + (inp - v_ref[...]) * (1.0 / TAU)
            spk = v >= V_TH
            v_ref[...] = jnp.where(spk, 0.0, v)            # hard reset, single state store
            return spk.astype(jnp.float32)

        def conv3x3_bn(w_ref, b_ref):
            # im2col: fold the 9 taps into the contraction dim -> ONE MXU matmul with
            # K = 9*C (bf16 x bf16 -> f32 accumulate).  Column order (kh, kw, ci) matches
            # w_hwio.reshape(9*C, Co) done in the wrapper.
            patches = [
                pad_ref[:, kh:kh + H, _LPAD + kw - 1:_LPAD + kw - 1 + W, :].reshape(M, C)
                for kh in range(3) for kw in range(3)
            ]
            lhs = jnp.concatenate(patches, axis=-1).astype(jnp.bfloat16)   # (M, 9C), {0,1}
            acc = jnp.dot(lhs, w_ref[...], preferred_element_type=jnp.float32)
            return (acc + b_ref[...]).reshape(Bt, H, W, C)

        x = x_ref[0]                                       # (Bt, H, W, C) f32

        s1 = lif(v1_ref, x)                                # sn1(x)
        pad_ref[:, 1:H + 1, _LPAD:_LPAD + W, :] = s1       # sublane-aligned interior store
        y1 = conv3x3_bn(w1_ref, b1_ref)                    # conv1 + bn1 (folded)

        s2 = lif(v2_ref, y1)                               # sn2(out)
        pad_ref[:, 1:H + 1, _LPAD:_LPAD + W, :] = s2
        y2 = conv3x3_bn(w2_ref, b2_ref)                    # conv2 + bn2 (folded)

        out_ref[0] = (y2 + x).astype(out_ref.dtype)        # + identity (downsample=None)

        if debug:   # verification-only taps; absent from the production variant
            s1_ref[0] = s1
            c1_ref[0] = y1
            s2_ref[0] = s2

    return kernel


def _pick_batch_tile(N, H, W, C, vmem_budget_bytes=12 << 20, target_rows=256):
    """Smallest divisor of N giving >= target_rows matmul rows (MXU fill), under a VMEM
    budget (2x double-buffered in/out blocks + 2 LIF membranes + halo scratch)."""
    def vmem_bytes(bt):
        blk = bt * H * W * C * 4
        pad = bt * (H + 2) * (_LPAD + W + 1) * C * 4
        return 4 * blk + 2 * blk + pad
    divisors = [d for d in range(1, N + 1)
                if N % d == 0 and vmem_bytes(d) <= vmem_budget_bytes]
    if not divisors:
        return 1
    for d in divisors:
        if d * H * W >= target_rows:
            return d
    return divisors[-1]


# ------------------------------------------------------------------ wrapper
def basic_block_forward(x_tnchw, params, *, batch_tile=None, debug=False):
    """MS-ResNet BasicBlock forward (stride=1, downsample=None), fused in one pallas_call.

    x_tnchw: [T, N, C, H, W] float32 (PyTorch layout) -> output in the same layout.
    params:  w1/w2 = conv3x3 weights with BatchNorm folded, HWIO (3, 3, Ci, Co);
             b1/b2 = folded BatchNorm bias, (Co,) float32.
    """
    T, N, C, H, W = x_tnchw.shape
    w1, b1, w2, b2 = params["w1"], params["b1"], params["w2"], params["b2"]
    P = w1.shape[-1]
    assert w1.shape == (3, 3, C, P) and w2.shape == (3, 3, P, P) and P == C, \
        "only the stride=1 / downsample=None BasicBlock path is implemented"
    # TODO(synk): stride > 1 / downsample path not implemented (module used with stride=1).

    x = jnp.transpose(x_tnchw, (0, 1, 3, 4, 2))            # [T, N, H, W, C] channels-last

    Bt = batch_tile if batch_tile is not None else _pick_batch_tile(N, H, W, C)
    assert N % Bt == 0
    nb = N // Bt

    # im2col-folded weights: rows ordered (kh, kw, ci) to match the in-kernel patch order.
    w1m = w1.reshape(9 * C, P).astype(jnp.bfloat16)
    w2m = w2.reshape(9 * P, P).astype(jnp.bfloat16)
    b1m = b1.reshape(1, P).astype(jnp.float32)
    b2m = b2.reshape(1, P).astype(jnp.float32)

    blk_io = pl.BlockSpec((1, Bt, H, W, C), lambda b, t: (t, b, 0, 0, 0))

    def full(shape):
        return pl.BlockSpec(shape, lambda b, t: (0,) * len(shape))

    out_shape_list = [jax.ShapeDtypeStruct((T, N, H, W, C), jnp.float32)]
    out_spec_list = [blk_io]
    if debug:
        out_shape_list += [jax.ShapeDtypeStruct((T, N, H, W, C), jnp.float32)] * 3
        out_spec_list += [blk_io] * 3

    outs = pl.pallas_call(
        _make_block_kernel(Bt, H, W, C, debug),
        out_shape=tuple(out_shape_list),
        grid_spec=pltpu.PrefetchScalarGridSpec(
            num_scalar_prefetch=0,
            grid=(nb, T),                                   # T innermost: LIF state is sequential
            in_specs=[
                blk_io,                                     # x  [T, N, H, W, C]
                full((9 * C, P)),                           # w1 (im2col-folded, bf16)
                full((1, P)),                               # b1
                full((9 * P, P)),                           # w2
                full((1, P)),                               # b2
            ],
            out_specs=tuple(out_spec_list),
            scratch_shapes=[
                pltpu.VMEM((Bt, H, W, C), jnp.float32),                   # LIF1 membrane
                pltpu.VMEM((Bt, H, W, P), jnp.float32),                   # LIF2 membrane
                pltpu.VMEM((Bt, H + 2, _LPAD + W + 1, C), jnp.float32),   # zero-halo spikes
            ],
        ),
        compiler_params=pltpu.CompilerParams(
            dimension_semantics=("parallel", "arbitrary"),   # batch tiles parallel, T stateful
            vmem_limit_bytes=32 * 1024 * 1024,
        ),
    )(x, w1m, b1m, w2m, b2m)

    out = jnp.transpose(outs[0], (0, 1, 4, 2, 3))            # back to [T, N, C, H, W]
    if debug:
        return out, dict(s1=outs[1], c1=outs[2], s2=outs[3])  # channels-last intermediates
    return out


basic_block_forward = jax.jit(basic_block_forward, static_argnames=("batch_tile", "debug"))


# ------------------------------------------------------------------ pure-JAX reference
def lif_ref(x_t):
    """Multi-step LIF reference (scan over axis 0), same arithmetic as the kernel."""
    def step(v, xt):
        v = v + (xt - v) * (1.0 / TAU)
        s = (v >= V_TH).astype(xt.dtype)
        v = jnp.where(v >= V_TH, 0.0, v)
        return v, s
    _, spikes = jax.lax.scan(step, jnp.zeros_like(x_t[0]), x_t)
    return spikes


def conv_bn_ref(x_nhwc, w_hwio, bias):
    y = jax.lax.conv_general_dilated(
        x_nhwc, w_hwio, window_strides=(1, 1), padding=((1, 1), (1, 1)),
        dimension_numbers=("NHWC", "HWIO", "NHWC"),
        precision=jax.lax.Precision.HIGHEST)
    return y + bias.reshape(1, 1, 1, -1)


# ------------------------------------------------------------------------ main
if __name__ == "__main__":
    key = jax.random.PRNGKey(0)
    T, N, C, H, W = 2, 2, 16, 8, 8
    planes = C                       # inplanes == planes, stride=1, downsample=None
    ks = jax.random.split(key, 11)

    x = 1.5 * jax.random.normal(ks[0], (T, N, C, H, W), jnp.float32)

    def make_conv_bn_params(kw_, kg, kb, km, kv, ci, co):
        # conv3x3 weight (PyTorch OIHW, bias=False) + BatchNorm2d folded (inference affine).
        # The folded weight is rounded to bf16 once so the MXU path and the f32 reference use
        # the exact same weights (spikes are {0,1}, so bf16 conv inputs are lossless).
        # TODO(synk): training-mode BatchNorm batch statistics are not reproduced.
        w_oihw = 0.2 * jax.random.normal(kw_, (co, ci, 3, 3), jnp.float32)
        gamma = 1.0 + 0.1 * jax.random.normal(kg, (co,), jnp.float32)
        beta = 0.1 * jax.random.normal(kb, (co,), jnp.float32)
        mean = 0.1 * jax.random.normal(km, (co,), jnp.float32)
        var = jax.random.uniform(kv, (co,), jnp.float32, minval=0.5, maxval=1.5)
        scale = gamma / jnp.sqrt(var + 1e-5)
        w_hwio = (jnp.transpose(w_oihw, (2, 3, 1, 0)) * scale).astype(jnp.bfloat16)
        bias = (beta - mean * scale).astype(jnp.float32)
        return w_hwio, bias

    w1, b1 = make_conv_bn_params(ks[1], ks[2], ks[3], ks[4], ks[5], C, planes)
    w2, b2 = make_conv_bn_params(ks[6], ks[7], ks[8], ks[9], ks[10], planes, planes)
    params = dict(w1=w1, b1=b1, w2=w2, b2=b2)

    # ---- production path (fused, no intermediate HBM traffic) ----
    out = basic_block_forward(x, params)
    out = jax.block_until_ready(out)
    assert out.shape == (T, N, C, H, W) and out.dtype == jnp.float32

    # ---- verification run (same fused kernel + debug taps) vs. pure-JAX reference ----
    out_dbg, inter = basic_block_forward(x, params, debug=True)
    out_dbg = jax.block_until_ready(out_dbg)

    x_nhwc = jnp.transpose(x, (0, 1, 3, 4, 2))
    s1, c1, s2 = inter["s1"], inter["c1"], inter["s2"]

    s1_ref = lif_ref(x_nhwc)
    assert bool(jnp.allclose(s1, s1_ref, atol=1e-6)), "sn1 mismatch"

    w1f, w2f = w1.astype(jnp.float32), w2.astype(jnp.float32)
    c1_ref = conv_bn_ref(s1.reshape(T * N, H, W, C), w1f, b1).reshape(T, N, H, W, planes)
    assert bool(jnp.allclose(c1, c1_ref, atol=1e-4, rtol=1e-4)), "conv1+bn1 mismatch"

    s2_ref = lif_ref(c1)
    assert bool(jnp.allclose(s2, s2_ref, atol=1e-6)), "sn2 mismatch"

    out_img_ref = conv_bn_ref(s2.reshape(T * N, H, W, planes), w2f, b2).reshape(
        T, N, H, W, planes) + x_nhwc
    out_dbg_nhwc = jnp.transpose(out_dbg, (0, 1, 3, 4, 2))
    out_nhwc = jnp.transpose(out, (0, 1, 3, 4, 2))
    assert bool(jnp.allclose(out_dbg_nhwc, out_img_ref, atol=1e-4, rtol=1e-4)), \
        "block output mismatch (debug)"
    assert bool(jnp.allclose(out_nhwc, out_img_ref, atol=1e-4, rtol=1e-4)), \
        "block output mismatch"
    assert bool(jnp.allclose(out, out_dbg, atol=1e-5)), "debug/production divergence"

    print("KERNEL_OK")
</pallas_src>

<mosaic_0001>
module attributes {stable_mosaic.version = 11 : i64} {
  func.func @kernel(%arg0: i32, %arg1: i32, %arg2: memref<1x2x8x8x16xf32, #tpu.memory_space<vmem>>, %arg3: memref<144x16xbf16, #tpu.memory_space<vmem>>, %arg4: memref<1x16xf32, #tpu.memory_space<vmem>>, %arg5: memref<144x16xbf16, #tpu.memory_space<vmem>>, %arg6: memref<1x16xf32, #tpu.memory_space<vmem>>, %arg7: memref<1x2x8x8x16xf32, #tpu.memory_space<vmem>>, %arg8: memref<2x8x8x16xf32, #tpu.memory_space<vmem>>, %arg9: memref<2x8x8x16xf32, #tpu.memory_space<vmem>>, %arg10: memref<2x10x17x16xf32, #tpu.memory_space<vmem>>) attributes {dimension_semantics = [#tpu.dimension_semantics<parallel>, #tpu.dimension_semantics<arbitrary>], iteration_bounds = array<i64: 1, 2>, scalar_prefetch = 0 : i64, scratch_operands = 3 : i64, tpu.core_type = #tpu.core_type<tc>, window_params = [{transform_indices = @transform_0, window_bounds = array<i64: 1, 2, 8, 8, 16>}, {pipeline_mode = #tpu.pipeline_mode<synchronous>, transform_indices = @transform_1, window_bounds = array<i64: 144, 16>}, {pipeline_mode = #tpu.pipeline_mode<synchronous>, transform_indices = @transform_2, window_bounds = array<i64: 1, 16>}, {pipeline_mode = #tpu.pipeline_mode<synchronous>, transform_indices = @transform_3, window_bounds = array<i64: 144, 16>}, {pipeline_mode = #tpu.pipeline_mode<synchronous>, transform_indices = @transform_4, window_bounds = array<i64: 1, 16>}, {transform_indices = @transform_5, window_bounds = array<i64: 1, 2, 8, 8, 16>}]} {
    %c0_i32 = arith.constant 0 : i32
    %0 = arith.cmpi eq, %arg1, %c0_i32 : i32
    %1 = arith.extui %0 : i1 to i32
    %c0_i32_0 = arith.constant 0 : i32
    %2 = arith.cmpi ne, %1, %c0_i32_0 : i32
    scf.if %2 {
      %cst_124 = arith.constant 0.000000e+00 : f32
      %89 = vector.broadcast %cst_124 : f32 to vector<2x8x8x16xf32>
      %c0_125 = arith.constant 0 : index
      %c0_126 = arith.constant 0 : index
      %c0_127 = arith.constant 0 : index
      %c0_128 = arith.constant 0 : index
      %90 = vector.load %arg8[%c0_125, %c0_126, %c0_127, %c0_128] : memref<2x8x8x16xf32, #tpu.memory_space<vmem>>, vector<2x8x8x16xf32>
      tpu.vector_store %arg8[%c0_125, %c0_126, %c0_127, %c0_128], %89 {strides = array<i32>} : memref<2x8x8x16xf32, #tpu.memory_space<vmem>>, vector<2x8x8x16xf32>,
      %cst_129 = arith.constant 0.000000e+00 : f32
      %91 = vector.broadcast %cst_129 : f32 to vector<2x8x8x16xf32>
      %c0_130 = arith.constant 0 : index
      %c0_131 = arith.constant 0 : index
      %c0_132 = arith.constant 0 : index
      %c0_133 = arith.constant 0 : index
      %92 = vector.load %arg9[%c0_130, %c0_131, %c0_132, %c0_133] : memref<2x8x8x16xf32, #tpu.memory_space<vmem>>, vector<2x8x8x16xf32>
      tpu.vector_store %arg9[%c0_130, %c0_131, %c0_132, %c0_133], %91 {strides = array<i32>} : memref<2x8x8x16xf32, #tpu.memory_space<vmem>>, vector<2x8x8x16xf32>,
      %cst_134 = arith.constant 0.000000e+00 : f32
      %93 = vector.broadcast %cst_134 : f32 to vector<2x10x17x16xf32>
      %c0_135 = arith.constant 0 : index
      %c0_136 = arith.constant 0 : index
      %c0_137 = arith.constant 0 : index
      %c0_138 = arith.constant 0 : index
      %94 = vector.load %arg10[%c0_135, %c0_136, %c0_137, %c0_138] : memref<2x10x17x16xf32, #tpu.memory_space<vmem>>, vector<2x10x17x16xf32>
      tpu.vector_store %arg10[%c0_135, %c0_136, %c0_137, %c0_138], %93 {strides = array<i32>} : memref<2x10x17x16xf32, #tpu.memory_space<vmem>>, vector<2x10x17x16xf32>,
    } else {
    }
    %c0 = arith.constant 0 : index
    %c0_1 = arith.constant 0 : index
    %c0_2 = arith.constant 0 : index
    %c0_3 = arith.constant 0 : index
    %c0_4 = arith.constant 0 : index
    %3 = vector.load %arg2[%c0, %c0_1, %c0_2, %c0_3, %c0_4] : memref<1x2x8x8x16xf32, #tpu.memory_space<vmem>>, vector<1x2x8x8x16xf32>
    %4 = vector.shape_cast %3 : vector<1x2x8x8x16xf32> to vector<2x8x8x16xf32>
    %c0_5 = arith.constant 0 : index
    %c0_6 = arith.constant 0 : index
    %c0_7 = arith.constant 0 : index
    %c0_8 = arith.constant 0 : index
    %5 = vector.load %arg8[%c0_5, %c0_6, %c0_7, %c0_8] : memref<2x8x8x16xf32, #tpu.memory_space<vmem>>, vector<2x8x8x16xf32>
    %c0_9 = arith.constant 0 : index
    %c0_10 = arith.constant 0 : index
    %c0_11 = arith.constant 0 : index
    %c0_12 = arith.constant 0 : index
    %6 = vector.load %arg8[%c0_9, %c0_10, %c0_11, %c0_12] : memref<2x8x8x16xf32, #tpu.memory_space<vmem>>, vector<2x8x8x16xf32>
    %7 = arith.subf %4, %6 : vector<2x8x8x16xf32>
    %cst = arith.constant 0.666666686 : f32
    %8 = vector.broadcast %cst : f32 to vector<2x8x8x16xf32>
    %9 = arith.mulf %7, %8 : vector<2x8x8x16xf32>
    %10 = arith.addf %5, %9 : vector<2x8x8x16xf32>
    %cst_13 = arith.constant 1.000000e+00 : f32
    %11 = vector.broadcast %cst_13 : f32 to vector<2x8x8x16xf32>
    %12 = arith.cmpf oge, %10, %11 : vector<2x8x8x16xf32>
    %cst_14 = arith.constant 0.000000e+00 : f32
    %13 = vector.broadcast %cst_14 : f32 to vector<2x8x8x16xf32>
    %14 = arith.select %12, %13, %10 : vector<2x8x8x16xi1>, vector<2x8x8x16xf32>
    %c0_15 = arith.constant 0 : index
    %c0_16 = arith.constant 0 : index
    %c0_17 = arith.constant 0 : index
    %c0_18 = arith.constant 0 : index
    %15 = vector.load %arg8[%c0_15, %c0_16, %c0_17, %c0_18] : memref<2x8x8x16xf32, #tpu.memory_space<vmem>>, vector<2x8x8x16xf32>
    tpu.vector_store %arg8[%c0_15, %c0_16, %c0_17, %c0_18], %14 {strides = array<i32>} : memref<2x8x8x16xf32, #tpu.memory_space<vmem>>, vector<2x8x8x16xf32>,
    %16 = arith.extui %12 : vector<2x8x8x16xi1> to vector<2x8x8x16xi32>
    %17 = arith.sitofp %16 : vector<2x8x8x16xi32> to vector<2x8x8x16xf32>
    %c0_19 = arith.constant 0 : index
    %c1 = arith.constant 1 : index
    %c8 = arith.constant 8 : index
    %c0_20 = arith.constant 0 : index
    %18 = vector.load %arg10[%c0_19, %c1, %c8, %c0_20] : memref<2x10x17x16xf32, #tpu.memory_space<vmem>>, vector<2x8x8x16xf32>
    tpu.vector_store %arg10[%c0_19, %c1, %c8, %c0_20], %17 {strides = array<i32>} : memref<2x10x17x16xf32, #tpu.memory_space<vmem>>, vector<2x8x8x16xf32>,
    %c0_21 = arith.constant 0 : index
    %c0_22 = arith.constant 0 : index
    %c7 = arith.constant 7 : index
    %c0_23 = arith.constant 0 : index
    %19 = vector.load %arg10[%c0_21, %c0_22, %c7, %c0_23] : memref<2x10x17x16xf32, #tpu.memory_space<vmem>>, vector<2x8x8x16xf32>
    %20 = vector.shape_cast %19 : vector<2x8x8x16xf32> to vector<128x16xf32>
    %c0_24 = arith.constant 0 : index
    %c0_25 = arith.constant 0 : index
    %c8_26 = arith.constant 8 : index
    %c0_27 = arith.constant 0 : index
    %21 = vector.load %arg10[%c0_24, %c0_25, %c8_26, %c0_27] : memref<2x10x17x16xf32, #tpu.memory_space<vmem>>, vector<2x8x8x16xf32>
    %22 = vector.shape_cast %21 : vector<2x8x8x16xf32> to vector<128x16xf32>
    %c0_28 = arith.constant 0 : index
    %c0_29 = arith.constant 0 : index
    %c9 = arith.constant 9 : index
    %c0_30 = arith.constant 0 : index
    %23 = vector.load %arg10[%c0_28, %c0_29, %c9, %c0_30] : memref<2x10x17x16xf32, #tpu.memory_space<vmem>>, vector<2x8x8x16xf32>
    %24 = vector.shape_cast %23 : vector<2x8x8x16xf32> to vector<128x16xf32>
    %c0_31 = arith.constant 0 : index
    %c1_32 = arith.constant 1 : index
    %c7_33 = arith.constant 7 : index
    %c0_34 = arith.constant 0 : index
    %25 = vector.load %arg10[%c0_31, %c1_32, %c7_33, %c0_34] : memref<2x10x17x16xf32, #tpu.memory_space<vmem>>, vector<2x8x8x16xf32>
    %26 = vector.shape_cast %25 : vector<2x8x8x16xf32> to vector<128x16xf32>
    %c0_35 = arith.constant 0 : index
    %c1_36 = arith.constant 1 : index
    %c8_37 = arith.constant 8 : index
    %c0_38 = arith.constant 0 : index
    %27 = vector.load %arg10[%c0_35, %c1_36, %c8_37, %c0_38] : memref<2x10x17x16xf32, #tpu.memory_space<vmem>>, vector<2x8x8x16xf32>
    %28 = vector.shape_cast %27 : vector<2x8x8x16xf32> to vector<128x16xf32>
    %c0_39 = arith.constant 0 : index
    %c1_40 = arith.constant 1 : index
    %c9_41 = arith.constant 9 : index
    %c0_42 = arith.constant 0 : index
    %29 = vector.load %arg10[%c0_39, %c1_40, %c9_41, %c0_42] : memref<2x10x17x16xf32, #tpu.memory_space<vmem>>, vector<2x8x8x16xf32>
    %30 = vector.shape_cast %29 : vector<2x8x8x16xf32> to vector<128x16xf32>
    %c0_43 = arith.constant 0 : index
    %c2 = arith.constant 2 : index
    %c7_44 = arith.constant 7 : index
    %c0_45 = arith.constant 0 : index
    %31 = vector.load %arg10[%c0_43, %c2, %c7_44, %c0_45] : memref<2x10x17x16xf32, #tpu.memory_space<vmem>>, vector<2x8x8x16xf32>
    %32 = vector.shape_cast %31 : vector<2x8x8x16xf32> to vector<128x16xf32>
    %c0_46 = arith.constant 0 : index
    %c2_47 = arith.constant 2 : index
    %c8_48 = arith.constant 8 : index
    %c0_49 = arith.constant 0 : index
    %33 = vector.load %arg10[%c0_46, %c2_47, %c8_48, %c0_49] : memref<2x10x17x16xf32, #tpu.memory_space<vmem>>, vector<2x8x8x16xf32>
    %34 = vector.shape_cast %33 : vector<2x8x8x16xf32> to vector<128x16xf32>
    %c0_50 = arith.constant 0 : index
    %c2_51 = arith.constant 2 : index
    %c9_52 = arith.constant 9 : index
    %c0_53 = arith.constant 0 : index
    %35 = vector.load %arg10[%c0_50, %c2_51, %c9_52, %c0_53] : memref<2x10x17x16xf32, #tpu.memory_space<vmem>>, vector<2x8x8x16xf32>
    %36 = vector.shape_cast %35 : vector<2x8x8x16xf32> to vector<128x16xf32>
    %37 = tpu.concatenate %20, %22, %24, %26, %28, %30, %32, %34, %36 in 1 : vector<128x16xf32>, vector<128x16xf32>, vector<128x16xf32>, vector<128x16xf32>, vector<128x16xf32>, vector<128x16xf32>, vector<128x16xf32>, vector<128x16xf32>, vector<128x16xf32> -> vector<128x144xf32>
    %38 = arith.truncf %37 : vector<128x144xf32> to vector<128x144xbf16>
    %c0_54 = arith.constant 0 : index
    %c0_55 = arith.constant 0 : index
    %39 = vector.load %arg3[%c0_54, %c0_55] : memref<144x16xbf16, #tpu.memory_space<vmem>>, vector<144x16xbf16>
    %cst_56 = arith.constant dense<0.000000e+00> : vector<128x16xf32>
    %40 = tpu.matmul %38, %39, %cst_56 {dimension_numbers = #tpu.dot_dimension_numbers<[1], [0], [0], [1], [0, 0, 1, 1], [], []>} : vector<128x144xbf16>, vector<144x16xbf16>, vector<128x16xf32> -> vector<128x16xf32>
    %c0_57 = arith.constant 0 : index
    %c0_58 = arith.constant 0 : index
    %41 = vector.load %arg4[%c0_57, %c0_58] : memref<1x16xf32, #tpu.memory_space<vmem>>, vector<1x16xf32>
    %42 = vector.broadcast %41 : vector<1x16xf32> to vector<128x16xf32>
    %43 = arith.addf %40, %42 : vector<128x16xf32>
    %44 = vector.shape_cast %43 : vector<128x16xf32> to vector<2x8x8x16xf32>
    %c0_59 = arith.constant 0 : index
    %c0_60 = arith.constant 0 : index
    %c0_61 = arith.constant 0 : index
    %c0_62 = arith.constant 0 : index
    %45 = vector.load %arg9[%c0_59, %c0_60, %c0_61, %c0_62] : memref<2x8x8x16xf32, #tpu.memory_space<vmem>>, vector<2x8x8x16xf32>
    %c0_63 = arith.constant 0 : index
    %c0_64 = arith.constant 0 : index
    %c0_65 = arith.constant 0 : index
    %c0_66 = arith.constant 0 : index
    %46 = vector.load %arg9[%c0_63, %c0_64, %c0_65, %c0_66] : memref<2x8x8x16xf32, #tpu.memory_space<vmem>>, vector<2x8x8x16xf32>
    %47 = arith.subf %44, %46 : vector<2x8x8x16xf32>
    %cst_67 = arith.constant 0.666666686 : f32
    %48 = vector.broadcast %cst_67 : f32 to vector<2x8x8x16xf32>
    %49 = arith.mulf %47, %48 : vector<2x8x8x16xf32>
    %50 = arith.addf %45, %49 : vector<2x8x8x16xf32>
    %cst_68 = arith.constant 1.000000e+00 : f32
    %51 = vector.broadcast %cst_68 : f32 to vector<2x8x8x16xf32>
    %52 = arith.cmpf oge, %50, %51 : vector<2x8x8x16xf32>
    %cst_69 = arith.constant 0.000000e+00 : f32
    %53 = vector.broadcast %cst_69 : f32 to vector<2x8x8x16xf32>
    %54 = arith.select %52, %53, %50 : vector<2x8x8x16xi1>, vector<2x8x8x16xf32>
    %c0_70 = arith.constant 0 : index
    %c0_71 = arith.constant 0 : index
    %c0_72 = arith.constant 0 : index
    %c0_73 = arith.constant 0 : index
    %55 = vector.load %arg9[%c0_70, %c0_71, %c0_72, %c0_73] : memref<2x8x8x16xf32, #tpu.memory_space<vmem>>, vector<2x8x8x16xf32>
    tpu.vector_store %arg9[%c0_70, %c0_71, %c0_72, %c0_73], %54 {strides = array<i32>} : memref<2x8x8x16xf32, #tpu.memory_space<vmem>>, vector<2x8x8x16xf32>,
    %56 = arith.extui %52 : vector<2x8x8x16xi1> to vector<2x8x8x16xi32>
    %57 = arith.sitofp %56 : vector<2x8x8x16xi32> to vector<2x8x8x16xf32>
    %c0_74 = arith.constant 0 : index
    %c1_75 = arith.constant 1 : index
    %c8_76 = arith.constant 8 : index
    %c0_77 = arith.constant 0 : index
    %58 = vector.load %arg10[%c0_74, %c1_75, %c8_76, %c0_77] : memref<2x10x17x16xf32, #tpu.memory_space<vmem>>, vector<2x8x8x16xf32>
    tpu.vector_store %arg10[%c0_74, %c1_75, %c8_76, %c0_77], %57 {strides = array<i32>} : memref<2x10x17x16xf32, #tpu.memory_space<vmem>>, vector<2x8x8x16xf32>,
    %c0_78 = arith.constant 0 : index
    %c0_79 = arith.constant 0 : index
    %c7_80 = arith.constant 7 : index
    %c0_81 = arith.constant 0 : index
    %59 = vector.load %arg10[%c0_78, %c0_79, %c7_80, %c0_81] : memref<2x10x17x16xf32, #tpu.memory_space<vmem>>, vector<2x8x8x16xf32>
    %60 = vector.shape_cast %59 : vector<2x8x8x16xf32> to vector<128x16xf32>
    %c0_82 = arith.constant 0 : index
    %c0_83 = arith.constant 0 : index
    %c8_84 = arith.constant 8 : index
    %c0_85 = arith.constant 0 : index
    %61 = vector.load %arg10[%c0_82, %c0_83, %c8_84, %c0_85] : memref<2x10x17x16xf32, #tpu.memory_space<vmem>>, vector<2x8x8x16xf32>
    %62 = vector.shape_cast %61 : vector<2x8x8x16xf32> to vector<128x16xf32>
    %c0_86 = arith.constant 0 : index
    %c0_87 = arith.constant 0 : index
    %c9_88 = arith.constant 9 : index
    %c0_89 = arith.constant 0 : index
    %63 = vector.load %arg10[%c0_86, %c0_87, %c9_88, %c0_89] : memref<2x10x17x16xf32, #tpu.memory_space<vmem>>, vector<2x8x8x16xf32>
    %64 = vector.shape_cast %63 : vector<2x8x8x16xf32> to vector<128x16xf32>
    %c0_90 = arith.constant 0 : index
    %c1_91 = arith.constant 1 : index
    %c7_92 = arith.constant 7 : index
    %c0_93 = arith.constant 0 : index
    %65 = vector.load %arg10[%c0_90, %c1_91, %c7_92, %c0_93] : memref<2x10x17x16xf32, #tpu.memory_space<vmem>>, vector<2x8x8x16xf32>
    %66 = vector.shape_cast %65 : vector<2x8x8x16xf32> to vector<128x16xf32>
    %c0_94 = arith.constant 0 : index
    %c1_95 = arith.constant 1 : index
    %c8_96 = arith.constant 8 : index
    %c0_97 = arith.constant 0 : index
    %67 = vector.load %arg10[%c0_94, %c1_95, %c8_96, %c0_97] : memref<2x10x17x16xf32, #tpu.memory_space<vmem>>, vector<2x8x8x16xf32>
    %68 = vector.shape_cast %67 : vector<2x8x8x16xf32> to vector<128x16xf32>
    %c0_98 = arith.constant 0 : index
    %c1_99 = arith.constant 1 : index
    %c9_100 = arith.constant 9 : index
    %c0_101 = arith.constant 0 : index
    %69 = vector.load %arg10[%c0_98, %c1_99, %c9_100, %c0_101] : memref<2x10x17x16xf32, #tpu.memory_space<vmem>>, vector<2x8x8x16xf32>
    %70 = vector.shape_cast %69 : vector<2x8x8x16xf32> to vector<128x16xf32>
    %c0_102 = arith.constant 0 : index
    %c2_103 = arith.constant 2 : index
    %c7_104 = arith.constant 7 : index
    %c0_105 = arith.constant 0 : index
    %71 = vector.load %arg10[%c0_102, %c2_103, %c7_104, %c0_105] : memref<2x10x17x16xf32, #tpu.memory_space<vmem>>, vector<2x8x8x16xf32>
    %72 = vector.shape_cast %71 : vector<2x8x8x16xf32> to vector<128x16xf32>
    %c0_106 = arith.constant 0 : index
    %c2_107 = arith.constant 2 : index
    %c8_108 = arith.constant 8 : index
    %c0_109 = arith.constant 0 : index
    %73 = vector.load %arg10[%c0_106, %c2_107, %c8_108, %c0_109] : memref<2x10x17x16xf32, #tpu.memory_space<vmem>>, vector<2x8x8x16xf32>
    %74 = vector.shape_cast %73 : vector<2x8x8x16xf32> to vector<128x16xf32>
    %c0_110 = arith.constant 0 : index
    %c2_111 = arith.constant 2 : index
    %c9_112 = arith.constant 9 : index
    %c0_113 = arith.constant 0 : index
    %75 = vector.load %arg10[%c0_110, %c2_111, %c9_112, %c0_113] : memref<2x10x17x16xf32, #tpu.memory_space<vmem>>, vector<2x8x8x16xf32>
    %76 = vector.shape_cast %75 : vector<2x8x8x16xf32> to vector<128x16xf32>
    %77 = tpu.concatenate %60, %62, %64, %66, %68, %70, %72, %74, %76 in 1 : vector<128x16xf32>, vector<128x16xf32>, vector<128x16xf32>, vector<128x16xf32>, vector<128x16xf32>, vector<128x16xf32>, vector<128x16xf32>, vector<128x16xf32>, vector<128x16xf32> -> vector<128x144xf32>
    %78 = arith.truncf %77 : vector<128x144xf32> to vector<128x144xbf16>
    %c0_114 = arith.constant 0 : index
    %c0_115 = arith.constant 0 : index
    %79 = vector.load %arg5[%c0_114, %c0_115] : memref<144x16xbf16, #tpu.memory_space<vmem>>, vector<144x16xbf16>
    %cst_116 = arith.constant dense<0.000000e+00> : vector<128x16xf32>
    %80 = tpu.matmul %78, %79, %cst_116 {dimension_numbers = #tpu.dot_dimension_numbers<[1], [0], [0], [1], [0, 0, 1, 1], [], []>} : vector<128x144xbf16>, vector<144x16xbf16>, vector<128x16xf32> -> vector<128x16xf32>
    %c0_117 = arith.constant 0 : index
    %c0_118 = arith.constant 0 : index
    %81 = vector.load %arg6[%c0_117, %c0_118] : memref<1x16xf32, #tpu.memory_space<vmem>>, vector<1x16xf32>
    %82 = vector.broadcast %81 : vector<1x16xf32> to vector<128x16xf32>
    %83 = arith.addf %80, %82 : vector<128x16xf32>
    %84 = vector.shape_cast %83 : vector<128x16xf32> to vector<2x8x8x16xf32>
    %85 = arith.addf %84, %4 : vector<2x8x8x16xf32>
    %c0_119 = arith.constant 0 : index
    %c0_120 = arith.constant 0 : index
    %c0_121 = arith.constant 0 : index
    %c0_122 = arith.constant 0 : index
    %c0_123 = arith.constant 0 : index
    %86 = vector.load %arg7[%c0_119, %c0_120, %c0_121, %c0_122, %c0_123] : memref<1x2x8x8x16xf32, #tpu.memory_space<vmem>>, vector<1x2x8x8x16xf32>
    %87 = vector.shape_cast %86 : vector<1x2x8x8x16xf32> to vector<2x8x8x16xf32>
    %88 = vector.shape_cast %85 : vector<2x8x8x16xf32> to vector<1x2x8x8x16xf32>
    tpu.vector_store %arg7[%c0_119, %c0_120, %c0_121, %c0_122, %c0_123], %88 {strides = array<i32>} : memref<1x2x8x8x16xf32, #tpu.memory_space<vmem>>, vector<1x2x8x8x16xf32>,
    return
  }
  func.func @transform_0(%arg0: i32, %arg1: i32) -> (i32, i32, i32, i32, i32) {
    %c0_i32 = arith.constant 0 : i32
    %c0_i32_0 = arith.constant 0 : i32
    %c0_i32_1 = arith.constant 0 : i32
    %c0_i32_2 = arith.constant 0 : i32
    return %arg1, %arg0, %c0_i32, %c0_i32_0, %c0_i32_1 : i32, i32, i32, i32, i32
  }
  func.func @transform_1(%arg0: i32, %arg1: i32) -> (i32, i32) {
    %c0_i32 = arith.constant 0 : i32
    %c0_i32_0 = arith.constant 0 : i32
    %c0_i32_1 = arith.constant 0 : i32
    return %c0_i32, %c0_i32_0 : i32, i32
  }
  func.func @transform_2(%arg0: i32, %arg1: i32) -> (i32, i32) {
    %c0_i32 = arith.constant 0 : i32
    %c0_i32_0 = arith.constant 0 : i32
    %c0_i32_1 = arith.constant 0 : i32
    return %c0_i32, %c0_i32_0 : i32, i32
  }
  func.func @transform_3(%arg0: i32, %arg1: i32) -> (i32, i32) {
    %c0_i32 = arith.constant 0 : i32
    %c0_i32_0 = arith.constant 0 : i32
    %c0_i32_1 = arith.constant 0 : i32
    return %c0_i32, %c0_i32_0 : i32, i32
  }
  func.func @transform_4(%arg0: i32, %arg1: i32) -> (i32, i32) {
    %c0_i32 = arith.constant 0 : i32
    %c0_i32_0 = arith.constant 0 : i32
    %c0_i32_1 = arith.constant 0 : i32
    return %c0_i32, %c0_i32_0 : i32, i32
  }
  func.func @transform_5(%arg0: i32, %arg1: i32) -> (i32, i32, i32, i32, i32) {
    %c0_i32 = arith.constant 0 : i32
    %c0_i32_0 = arith.constant 0 : i32
    %c0_i32_1 = arith.constant 0 : i32
    %c0_i32_2 = arith.constant 0 : i32
    return %arg1, %arg0, %c0_i32, %c0_i32_0, %c0_i32_1 : i32, i32, i32, i32, i32
  }
}

</mosaic_0001>

<llo_original>
// kernel: basic_block_forward.1
$region0: #{basic_block_forward.1}
  #allocation0 [shape = 'u32[]', space=smem, size = 0x4, offset = 0x4, fixed_abs, tag = 'smem constant byte address 0x4 - core index']
  #allocation1 [shape = 'u32[144,128]{1,0:T(1,128)}', space=vmem, size = 0x12000, scoped, tag = 'internal scratch']
  #allocation2 [shape = 'f32[2,8,8,16]{3,2,1,0:T(8,128)}', space=vmem, size = 0x10000, scoped, tag = 'scratch operand']
  #allocation3 [shape = 'f32[2,8,8,16]{3,2,1,0:T(8,128)}', space=vmem, size = 0x10000, scoped, tag = 'scratch operand']
  #allocation4 [shape = 'f32[2,10,17,16]{3,2,1,0:T(8,128)}', space=vmem, size = 0x3c000, scoped, tag = 'scratch operand']
  %s0 = inlined_call_operand.hbm [shape: f32[2,2,8,8,16], index: 0, kind: input, shape index: {}]
  %s1 = inlined_call_operand.hbm [shape: bf16[144,16], index: 1, kind: input, shape index: {}]
  %s2 = inlined_call_operand.vmem [shape: f32[1,16], index: 2, kind: input, shape index: {}]
  %s3 = inlined_call_operand.hbm [shape: bf16[144,16], index: 3, kind: input, shape index: {}]
  %s4 = inlined_call_operand.vmem [shape: f32[1,16], index: 4, kind: input, shape index: {}]
  %s5 = inlined_call_operand.hbm [shape: f32[2,2,8,8,16], index: 5, kind: output, shape index: {}]
  %s6 = sld [smem:[#allocation0]]
  $region69: #{basic_block_forward.1} parent=0
    _
  %s8 = ssub.s32 1, %s6
  %s9 = scalar_select 0, %s8, %s6
  $region1: #{basic_block_forward.1} parent=0
    #allocation5 [shape = 'u8[131072]{0}', space=vmem, size = 0x20000, scoped, tag = 'input window, operand 0']
    #allocation6 [shape = 's32[2]{0}', space=sflag, size = 0x8, scoped, tag = 'scoped memory for basic_block_forward.1']
    #allocation7 [shape = 's32[2]{0}', space=sflag, size = 0x8, scoped, tag = 'scoped memory for basic_block_forward.1']
    #allocation8 [shape = 'u8[36864]{0}', space=vmem, size = 0x9000, scoped, tag = 'input window, operand 1, single buffered']
    #allocation9 [shape = 's32[1]{0}', space=sflag, size = 0x4, scoped, tag = 'scoped memory for basic_block_forward.1']
    #allocation10 [shape = 'u8[36864]{0}', space=vmem, size = 0x9000, scoped, tag = 'input window, operand 3, single buffered']
    #allocation11 [shape = 'u8[131072]{0}', space=vmem, size = 0x20000, scoped, tag = 'output window, operand 0']
    %10 = vsyncpa [#allocation6], 0
    %s11 = scalar_lea.sflag [#allocation6], 1
    %12 = vsyncpa %s11, 0
    %13 = vsyncpa [#allocation9], 0
    %14 = vsyncpa [#allocation7], 0
    %s15 = scalar_lea.sflag [#allocation7], 1
    %16 = vsyncpa %s15, 0
    loop: start=0, step=1, limit=4
    $region2: #{basic_block_forward.1} parent=1 // loop_pre_header
      _
    $region3: #{basic_block_forward.1} parent=1 // loop_header
      %s18 = sphi 0, %s22
      %p19 = scmp.ge.s32.totalorder %s18, 4
      %s25 = sphi 0, %s37
      %s26 = sphi 0, %s33
      %s27 = sphi 0, %s25
      %s28 = sphi 0, %s26
      %s29 = sphi 0, %s27
      %s30 = sphi 0, %s28
      %s42 = sphi 0, %s44
      %s45 = sphi 0, %s42
      %s46 = sphi 0, %s45
      %s62 = sphi 0, %s46
      %s66 = sphi 0, %s66
      %s68 = sphi 0, %s66
      %s69 = sphi 0, %s68
      %s83 = sphi 0, %s69
      %s87 = sphi 0, %s87
      %s89 = sphi 0, %s87
      %s90 = sphi 0, %s89
      %s104 = sphi 0, %s90
      %s108 = sphi 0, %s108
      %s110 = sphi 0, %s108
      %s111 = sphi 0, %s110
      %s125 = sphi 0, %s111
      %s129 = sphi 0, %s129
      %s131 = sphi 0, %s129
      %s132 = sphi 0, %s131
      %s146 = sphi 0, %s132
      %s154 = sphi 0, %s156
      %s157 = sphi 0, %s154
      %s158 = sphi 0, %s157
      %s174 = sphi 0, %s158
    $region4: #{basic_block_forward.1} parent=1 // loop_header_branch
      %21 = sbr.rel (%p19) target = $region8
    $region5: #{basic_block_forward.1} parent=1 // loop_body
      %s23 = ssub.s32 %s18, 1
      %s24 = ssub.s32 %s18, 2
      %s31 = sadd.s32 1, %s26
      %p32 = scmp.ge.s32.totalorder %s31, 2
      %s33 = scalar_select %p32, 0, %s31
      %s34 = sadd.s32 1, %s25
      %s35 = scalar_select %p32, %s34, %s25
      %p36 = scmp.ge.s32.totalorder %s35, 1
      %s37 = scalar_select %p36, 0, %s35
      %s38 = ssub.s32 %s26, %s33
      %s39 = ssub.s32 %s25, %s37
      %s40 = sor.u32 %s38, %s39
      %p41 = scmp.eq.s32.totalorder %s40, 0
      %s43 = sadd.s32 %s42, 1
      %s44 = scalar_select %p41, %s42, %s43
      %p47 = pneg %p41
      %p48 = scmp.eq.s32.totalorder %s18, 1
      %p49 = por %p47, %p48
      %p50 = scmp.ne.s32.totalorder %s42, %s45
      %p51 = scmp.eq.s32.totalorder %s18, 0
      %p52 = por %p50, %p51
      %p53 = scmp.ne.s32.totalorder %s42, %s45
      %p54 = scmp.eq.s32.totalorder %s23, 1
      %p55 = por %p53, %p54
      %p56 = scmp.ne.s32.totalorder %s45, %s46
      %p57 = scmp.eq.s32.totalorder %s23, 0
      %p58 = por %p56, %p57
      %p59 = scmp.ne.s32.totalorder %s45, %s46
      %p60 = scmp.eq.s32.totalorder %s24, 1
      %p61 = por %p59, %p60
      %p63 = scmp.ne.s32.totalorder %s46, %s62
      %p64 = scmp.eq.s32.totalorder %s24, 0
      %p65 = por %p63, %p64
      %s67 = sadd.s32 %s66, 1
      %p70 = scmp.eq.s32.totalorder %s18, 1
      %p71 = scmp.ne.s32.totalorder %s66, %s68
      %p72 = scmp.eq.s32.totalorder %s18, 0
      %p73 = por %p71, %p72
      %p74 = scmp.ne.s32.totalorder %s66, %s68
      %p75 = scmp.eq.s32.totalorder %s23, 1
      %p76 = por %p74, %p75
      %p77 = scmp.ne.s32.totalorder %s68, %s69
      %p78 = scmp.eq.s32.totalorder %s23, 0
      %p79 = por %p77, %p78
      %p80 = scmp.ne.s32.totalorder %s68, %s69
      %p81 = scmp.eq.s32.totalorder %s24, 1
      %p82 = por %p80, %p81
      %p84 = scmp.ne.s32.totalorder %s69, %s83
      %p85 = scmp.eq.s32.totalorder %s24, 0
      %p86 = por %p84, %p85
      %s88 = sadd.s32 %s87, 1
      %p91 = scmp.eq.s32.totalorder %s18, 1
      %p92 = scmp.ne.s32.totalorder %s87, %s89
      %p93 = scmp.eq.s32.totalorder %s18, 0
      %p94 = por %p92, %p93
      %p95 = scmp.ne.s32.totalorder %s87, %s89
      %p96 = scmp.eq.s32.totalorder %s23, 1
      %p97 = por %p95, %p96
      %p98 = scmp.ne.s32.totalorder %s89, %s90
      %p99 = scmp.eq.s32.totalorder %s23, 0
      %p100 = por %p98, %p99
      %p101 = scmp.ne.s32.totalorder %s89, %s90
      %p102 = scmp.eq.s32.totalorder %s24, 1
      %p103 = por %p101, %p102
      %p105 = scmp.ne.s32.totalorder %s90, %s104
      %p106 = scmp.eq.s32.totalorder %s24, 0
      %p107 = por %p105, %p106
      %s109 = sadd.s32 %s108, 1
      %p112 = scmp.eq.s32.totalorder %s18, 1
      %p113 = scmp.ne.s32.totalorder %s108, %s110
      %p114 = scmp.eq.s32.totalorder %s18, 0
      %p115 = por %p113, %p114
      %p116 = scmp.ne.s32.totalorder %s108, %s110
      %p117 = scmp.eq.s32.totalorder %s23, 1
      %p118 = por %p116, %p117
      %p119 = scmp.ne.s32.totalorder %s110, %s111
      %p120 = scmp.eq.s32.totalorder %s23, 0
      %p121 = por %p119, %p120
      %p122 = scmp.ne.s32.totalorder %s110, %s111
      %p123 = scmp.eq.s32.totalorder %s24, 1
      %p124 = por %p122, %p123
      %p126 = scmp.ne.s32.totalorder %s111, %s125
      %p127 = scmp.eq.s32.totalorder %s24, 0
      %p128 = por %p126, %p127
      %s130 = sadd.s32 %s129, 1
      %p133 = scmp.eq.s32.totalorder %s18, 1
      %p134 = scmp.ne.s32.totalorder %s129, %s131
      %p135 = scmp.eq.s32.totalorder %s18, 0
      %p136 = por %p134, %p135
      %p137 = scmp.ne.s32.totalorder %s129, %s131
      %p138 = scmp.eq.s32.totalorder %s23, 1
      %p139 = por %p137, %p138
      %p140 = scmp.ne.s32.totalorder %s131, %s132
      %p141 = scmp.eq.s32.totalorder %s23, 0
      %p142 = por %p140, %p141
      %p143 = scmp.ne.s32.totalorder %s131, %s132
      %p144 = scmp.eq.s32.totalorder %s24, 1
      %p145 = por %p143, %p144
      %p147 = scmp.ne.s32.totalorder %s132, %s146
      %p148 = scmp.eq.s32.totalorder %s24, 0
      %p149 = por %p147, %p148
      %s150 = ssub.s32 %s26, %s33
      %s151 = ssub.s32 %s25, %s37
      %s152 = sor.u32 %s150, %s151
      %p153 = scmp.eq.s32.totalorder %s152, 0
      %s155 = sadd.s32 %s154, 1
      %s156 = scalar_select %p153, %s154, %s155
      %p159 = pneg %p153
      %p160 = scmp.eq.s32.totalorder %s18, 1
      %p161 = por %p159, %p160
      %p162 = scmp.ne.s32.totalorder %s154, %s157
      %p163 = scmp.eq.s32.totalorder %s18, 0
      %p164 = por %p162, %p163
      %p165 = scmp.ne.s32.totalorder %s154, %s157
      %p166 = scmp.eq.s32.totalorder %s23, 1
      %p167 = por %p165, %p166
      %p168 = scmp.ne.s32.totalorder %s157, %s158
      %p169 = scmp.eq.s32.totalorder %s23, 0
      %p170 = por %p168, %p169
      %p171 = scmp.ne.s32.totalorder %s157, %s158
      %p172 = scmp.eq.s32.totalorder %s24, 1
      %p173 = por %p171, %p172
      %p175 = scmp.ne.s32.totalorder %s158, %s174
      %p176 = scmp.eq.s32.totalorder %s24, 0
      %p177 = por %p175, %p176
      %p178 = scmp.le.s32.totalorder 1, %s18
      %p179 = scmp.lt.s32.totalorder %s18, 3
      %p180 = pnand %p178, %p179
      %p181 = pneg %p180
      // Predicated region
      $region9: #{basic_block_forward.1} parent=5 // pred_check
        _
      $region10: #{basic_block_forward.1} parent=5 // pred_check_branch
        %183 = sbr.rel (%p180) target = $region12
      $region11: #{basic_block_forward.1} parent=5 // pred_region
        %s184 = ssub.s32 %s18, 1
        // Predicated region
        $region13: #{basic_block_forward.1} parent=11 // pred_check
          %p185 = pneg %p79
        $region14: #{basic_block_forward.1} parent=11 // pred_check_branch
          %187 = sbr.rel (%p185) target = $region16
        $region15: #{basic_block_forward.1} parent=11 // pred_region
          %s189 = ssub.s32 1152, 1152
          %190 = vsyncadd [#allocation9], %s189
          %s191 = sshll.u32 [#allocation8], 4
          %s192 = int_to_ptr.vmem [resolvable:$true] %s191
          %197 = dma.hbm_to_vmem [thread:$0]  %s1, 1152, %s192, [#allocation9], 64, 64, 4
        $region16: #{basic_block_forward.1} parent=11 // pred_fallthru
          _
        // Predicated region
        $region17: #{basic_block_forward.1} parent=11 // pred_check
          %p198 = pneg %p100
        $region18: #{basic_block_forward.1} parent=11 // pred_check_branch
          %200 = sbr.rel (%p198) target = $region20
        $region19: #{basic_block_forward.1} parent=11 // pred_region
          _
        $region20: #{basic_block_forward.1} parent=11 // pred_fallthru
          _
        // Predicated region
        $region21: #{basic_block_forward.1} parent=11 // pred_check
          %p201 = pneg %p121
        $region22: #{basic_block_forward.1} parent=11 // pred_check_branch
          %203 = sbr.rel (%p201) target = $region24
        $region23: #{basic_block_forward.1} parent=11 // pred_region
          %s205 = ssub.s32 1152, 1152
          %206 = vsyncadd [#allocation9], %s205
          %s207 = sshll.u32 [#allocation10], 4
          %s208 = int_to_ptr.vmem [resolvable:$true] %s207
          %213 = dma.hbm_to_vmem [thread:$0]  %s3, 1152, %s208, [#allocation9], 64, 64, 4
        $region24: #{basic_block_forward.1} parent=11 // pred_fallthru
          _
        // Predicated region
        $region25: #{basic_block_forward.1} parent=11 // pred_check
          %p214 = pneg %p142
        $region26: #{basic_block_forward.1} parent=11 // pred_check_branch
          %216 = sbr.rel (%p214) target = $region28
        $region27: #{basic_block_forward.1} parent=11 // pred_region
          _
        $region28: #{basic_block_forward.1} parent=11 // pred_fallthru
          _
      $region12: #{basic_block_forward.1} parent=5 // pred_fallthru
        _
      %p217 = scmp.lt.s32.totalorder %s18, 2
      // Predicated region
      $region29: #{basic_block_forward.1} parent=5 // pred_check
        %p218 = pneg %p217
      $region30: #{basic_block_forward.1} parent=5 // pred_check_branch
        %220 = sbr.rel (%p218) target = $region32
      $region31: #{basic_block_forward.1} parent=5 // pred_region
        // Predicated region
        $region33: #{basic_block_forward.1} parent=31 // pred_check
          %p221 = pneg %p52
        $region34: #{basic_block_forward.1} parent=31 // pred_check_branch
          %223 = sbr.rel (%p221) target = $region36
        $region35: #{basic_block_forward.1} parent=31 // pred_region
          %s224 = sand.u32 %s42, 1
          %s225 = scalar_lea.sflag [#allocation6], %s224
          %s226 = sand.u32 %s42, 1
          %s227 = smul.addr %s226, 128
          %s228 = scalar_lea.vmem [#allocation5], %s227
          %s229 = smul.u32 2, %s25
          %s231 = ssub.s32 2048, 2048
          %232 = vsyncadd %s225, %s231
          %s233 = smul.addr %s229, 8
          %s234 = smul.addr %s26, 16
          %s235 = sadd.s32 %s233, %s234
          %s236 = smul.addr %s235, 128
          %s237 = scalar_lea.hbm %s0, %s236
          %s238 = sshll.u32 %s228, 4
          %s239 = int_to_ptr.vmem [resolvable:$true] %s238
          %244 = dma.hbm_to_vmem [thread:$0]  %s237, 2048, %s239, %s225, 128, 128, 8
        $region36: #{basic_block_forward.1} parent=31 // pred_fallthru
          _
      $region32: #{basic_block_forward.1} parent=5 // pred_fallthru
        _
      %p245 = scmp.le.s32.totalorder 1, %s18
      %p246 = scmp.lt.s32.totalorder %s18, 3
      %p247 = pnand %p245, %p246
      %p248 = pneg %p247
      // Predicated region
      $region37: #{basic_block_forward.1} parent=5 // pred_check
        _
      $region38: #{basic_block_forward.1} parent=5 // pred_check_branch
        %250 = sbr.rel (%p247) target = $region40
      $region39: #{basic_block_forward.1} parent=5 // pred_region
        %s251 = ssub.s32 %s18, 1
        %s252 = sand.u32 %s45, 1
        %s253 = scalar_lea.sflag [#allocation6], %s252
        %s254 = sand.u32 %s45, 1
        %s255 = smul.addr %s254, 128
        %s256 = scalar_lea.vmem [#allocation5], %s255
        // Predicated region
        $region41: #{basic_block_forward.1} parent=39 // pred_check
          %p257 = pneg %p58
        $region42: #{basic_block_forward.1} parent=39 // pred_check_branch
          %259 = sbr.rel (%p257) target = $region44
        $region43: #{basic_block_forward.1} parent=39 // pred_region
          %260 = dma.done %s253, 2048
        $region44: #{basic_block_forward.1} parent=39 // pred_fallthru
          _
        // Predicated region
        $region45: #{basic_block_forward.1} parent=39 // pred_check
          %p261 = pneg %p79
        $region46: #{basic_block_forward.1} parent=39 // pred_check_branch
          %263 = sbr.rel (%p261) target = $region48
        $region47: #{basic_block_forward.1} parent=39 // pred_region
          %264 = dma.done [#allocation9], 1152
        $region48: #{basic_block_forward.1} parent=39 // pred_fallthru
          _
        // Predicated region
        $region49: #{basic_block_forward.1} parent=39 // pred_check
          %p265 = pneg %p121
        $region50: #{basic_block_forward.1} parent=39 // pred_check_branch
          %267 = sbr.rel (%p265) target = $region52
        $region51: #{basic_block_forward.1} parent=39 // pred_region
          %268 = dma.done [#allocation9], 1152
        $region52: #{basic_block_forward.1} parent=39 // pred_fallthru
          _
        %s269 = sand.u32 %s45, 1
        %s270 = scalar_lea.sflag [#allocation6], %s269
        %s271 = sand.u32 %s45, 1
        %s272 = smul.addr %s271, 128
        %s273 = scalar_lea.vmem [#allocation5], %s272
        %p274 = pneg %p58
        %p275 = pneg %p55
        %p276 = pneg %p79
        %p277 = pneg %p76
        %p278 = pneg %p100
        %p279 = pneg %p97
        %p280 = pneg %p121
        %p281 = pneg %p118
        %p282 = pneg %p142
        %p283 = pneg %p139
        %p284 = pneg %p170
        %p285 = pneg %p167
        %s286 = sand.u32 %s157, 1
        %s287 = scalar_lea.sflag [#allocation7], %s286
        %s288 = sand.u32 %s157, 1
        %s289 = smul.addr %s288, 128
        %s290 = scalar_lea.vmem [#allocation11], %s289
        %s291 = smul.u32 2, %s27
        %s292 = smul.u32 2, %s27
        %p294 = scmp.eq.s32.totalorder %s28, 0
        // Predicated region
        $region53: #{basic_block_forward.1} parent=39 // pred_check
          %p295 = pneg %p294
        $region54: #{basic_block_forward.1} parent=39 // pred_check_branch
          %297 = sbr.rel (%p295) target = $region56
        $region55: #{basic_block_forward.1} parent=39 // pred_region
          %vm298 = vcmask 130048
          %299 = vst.msk [vmem:[#allocation2] sm:$0xff] %vm298, 0.0
          %300 = vst.msk [vmem:[#allocation2 + $0x8] sm:$0xff] %vm298, 0.0
          %301 = vst.msk [vmem:[#allocation2 + $0x10] sm:$0xff] %vm298, 0.0
          %302 = vst.msk [vmem:[#allocation2 + $0x18] sm:$0xff] %vm298, 0.0
          %303 = vst.msk [vmem:[#allocation2 + $0x20] sm:$0xff] %vm298, 0.0
          %304 = vst.msk [vmem:[#allocation2 + $0x28] sm:$0xff] %vm298, 0.0
          %305 = vst.msk [vmem:[#allocation2 + $0x30] sm:$0xff] %vm298, 0.0
          %306 = vst.msk [vmem:[#allocation2 + $0x38] sm:$0xff] %vm298, 0.0
          %307 = vst.msk [vmem:[#allocation2 + $0x40] sm:$0xff] %vm298, 0.0
          %308 = vst.msk [vmem:[#allocation2 + $0x48] sm:$0xff] %vm298, 0.0
          %309 = vst.msk [vmem:[#allocation2 + $0x50] sm:$0xff] %vm298, 0.0
          %310 = vst.msk [vmem:[#allocation2 + $0x58] sm:$0xff] %vm298, 0.0
          %311 = vst.msk [vmem:[#allocation2 + $0x60] sm:$0xff] %vm298, 0.0
          %312 = vst.msk [vmem:[#allocation2 + $0x68] sm:$0xff] %vm298, 0.0
          %313 = vst.msk [vmem:[#allocation2 + $0x70] sm:$0xff] %vm298, 0.0
          %314 = vst.msk [vmem:[#allocation2 + $0x78] sm:$0xff] %vm298, 0.0
          %315 = vst.msk [vmem:[#allocation3] sm:$0xff] %vm298, 0.0
          %316 = vst.msk [vmem:[#allocation3 + $0x8] sm:$0xff] %vm298, 0.0
          %317 = vst.msk [vmem:[#allocation3 + $0x10] sm:$0xff] %vm298, 0.0
          %318 = vst.msk [vmem:[#allocation3 + $0x18] sm:$0xff] %vm298, 0.0
          %319 = vst.msk [vmem:[#allocation3 + $0x20] sm:$0xff] %vm298, 0.0
          %320 = vst.msk [vmem:[#allocation3 + $0x28] sm:$0xff] %vm298, 0.0
          %321 = vst.msk [vmem:[#allocation3 + $0x30] sm:$0xff] %vm298, 0.0
          %322 = vst.msk [vmem:[#allocation3 + $0x38] sm:$0xff] %vm298, 0.0
          %323 = vst.msk [vmem:[#allocation3 + $0x40] sm:$0xff] %vm298, 0.0
          %324 = vst.msk [vmem:[#allocation3 + $0x48] sm:$0xff] %vm298, 0.0
          %325 = vst.msk [vmem:[#allocation3 + $0x50] sm:$0xff] %vm298, 0.0
          %326 = vst.msk [vmem:[#allocation3 + $0x58] sm:$0xff] %vm298, 0.0
          %327 = vst.msk [vmem:[#allocation3 + $0x60] sm:$0xff] %vm298, 0.0
          %328 = vst.msk [vmem:[#allocation3 + $0x68] sm:$0xff] %vm298, 0.0
          %329 = vst.msk [vmem:[#allocation3 + $0x70] sm:$0xff] %vm298, 0.0
          %330 = vst.msk [vmem:[#allocation3 + $0x78] sm:$0xff] %vm298, 0.0
          %331 = vst.msk [vmem:[#allocation4] sm:$0xff] %vm298, 0.0
          %332 = vst.msk [vmem:[#allocation4 + $0x8] sm:$0xff] %vm298, 0.0
          %vm333 = vcmask 122880
          %334 = vst.msk [vmem:[#allocation4 + $0x10] sm:$0x1] %vm333, 0.0
          %335 = vst.msk [vmem:[#allocation4 + $0x18] sm:$0xff] %vm298, 0.0
          %336 = vst.msk [vmem:[#allocation4 + $0x20] sm:$0xff] %vm298, 0.0
          %337 = vst.msk [vmem:[#allocation4 + $0x28] sm:$0x1] %vm333, 0.0
          %338 = vst.msk [vmem:[#allocation4 + $0x30] sm:$0xff] %vm298, 0.0
          %339 = vst.msk [vmem:[#allocation4 + $0x38] sm:$0xff] %vm298, 0.0
          %340 = vst.msk [vmem:[#allocation4 + $0x40] sm:$0x1] %vm333, 0.0
          %341 = vst.msk [vmem:[#allocation4 + $0x48] sm:$0xff] %vm298, 0.0
          %342 = vst.msk [vmem:[#allocation4 + $0x50] sm:$0xff] %vm298, 0.0
          %343 = vst.msk [vmem:[#allocation4 + $0x58] sm:$0x1] %vm333, 0.0
          %344 = vst.msk [vmem:[#allocation4 + $0x60] sm:$0xff] %vm298, 0.0
          %345 = vst.msk [vmem:[#allocation4 + $0x68] sm:$0xff] %vm298, 0.0
          %346 = vst.msk [vmem:[#allocation4 + $0x70] sm:$0x1] %vm333, 0.0
          %347 = vst.msk [vmem:[#allocation4 + $0x78] sm:$0xff] %vm298, 0.0
          %348 = vst.msk [vmem:[#allocation4 + $0x80] sm:$0xff] %vm298, 0.0
          %349 = vst.msk [vmem:[#allocation4 + $0x88] sm:$0x1] %vm333, 0.0
          %350 = vst.msk [vmem:[#allocation4 + $0x90] sm:$0xff] %vm298, 0.0
          %351 = vst.msk [vmem:[#allocation4 + $0x98] sm:$0xff] %vm298, 0.0
          %352 = vst.msk [vmem:[#allocation4 + $0xa0] sm:$0x1] %vm333, 0.0
          %353 = vst.msk [vmem:[#allocation4 + $0xa8] sm:$0xff] %vm298, 0.0
          %354 = vst.msk [vmem:[#allocation4 + $0xb0] sm:$0xff] %vm298, 0.0
          %355 = vst.msk [vmem:[#allocation4 + $0xb8] sm:$0x1] %vm333, 0.0
          %356 = vst.msk [vmem:[#allocation4 + $0xc0] sm:$0xff] %vm298, 0.0
          %357 = vst.msk [vmem:[#allocation4 + $0xc8] sm:$0xff] %vm298, 0.0
          %358 = vst.msk [vmem:[#allocation4 + $0xd0] sm:$0x1] %vm333, 0.0
          %359 = vst.msk [vmem:[#allocation4 + $0xd8] sm:$0xff] %vm298, 0.0
          %360 = vst.msk [vmem:[#allocation4 + $0xe0] sm:$0xff] %vm298, 0.0
          %361 = vst.msk [vmem:[#allocation4 + $0xe8] sm:$0x1] %vm333, 0.0
          %362 = vst.msk [vmem:[#allocation4 + $0xf0] sm:$0xff] %vm298, 0.0
          %363 = vst.msk [vmem:[#allocation4 + $0xf8] sm:$0xff] %vm298, 0.0
          %364 = vst.msk [vmem:[#allocation4 + $0x100] sm:$0x1] %vm333, 0.0
          %365 = vst.msk [vmem:[#allocation4 + $0x108] sm:$0xff] %vm298, 0.0
          %366 = vst.msk [vmem:[#allocation4 + $0x110] sm:$0xff] %vm298, 0.0
          %367 = vst.msk [vmem:[#allocation4 + $0x118] sm:$0x1] %vm333, 0.0
          %368 = vst.msk [vmem:[#allocation4 + $0x120] sm:$0xff] %vm298, 0.0
          %369 = vst.msk [vmem:[#allocation4 + $0x128] sm:$0xff] %vm298, 0.0
          %370 = vst.msk [vmem:[#allocation4 + $0x130] sm:$0x1] %vm333, 0.0
          %371 = vst.msk [vmem:[#allocation4 + $0x138] sm:$0xff] %vm298, 0.0
          %372 = vst.msk [vmem:[#allocation4 + $0x140] sm:$0xff] %vm298, 0.0
          %373 = vst.msk [vmem:[#allocation4 + $0x148] sm:$0x1] %vm333, 0.0
          %374 = vst.msk [vmem:[#allocation4 + $0x150] sm:$0xff] %vm298, 0.0
          %375 = vst.msk [vmem:[#allocation4 + $0x158] sm:$0xff] %vm298, 0.0
          %376 = vst.msk [vmem:[#allocation4 + $0x160] sm:$0x1] %vm333, 0.0
          %377 = vst.msk [vmem:[#allocation4 + $0x168] sm:$0xff] %vm298, 0.0
          %378 = vst.msk [vmem:[#allocation4 + $0x170] sm:$0xff] %vm298, 0.0
          %379 = vst.msk [vmem:[#allocation4 + $0x178] sm:$0x1] %vm333, 0.0
          %380 = vst.msk [vmem:[#allocation4 + $0x180] sm:$0xff] %vm298, 0.0
          %381 = vst.msk [vmem:[#allocation4 + $0x188] sm:$0xff] %vm298, 0.0
          %382 = vst.msk [vmem:[#allocation4 + $0x190] sm:$0x1] %vm333, 0.0
          %383 = vst.msk [vmem:[#allocation4 + $0x198] sm:$0xff] %vm298, 0.0
          %384 = vst.msk [vmem:[#allocation4 + $0x1a0] sm:$0xff] %vm298, 0.0
          %385 = vst.msk [vmem:[#allocation4 + $0x1a8] sm:$0x1] %vm333, 0.0
          %386 = vst.msk [vmem:[#allocation4 + $0x1b0] sm:$0xff] %vm298, 0.0
          %387 = vst.msk [vmem:[#allocation4 + $0x1b8] sm:$0xff] %vm298, 0.0
          %388 = vst.msk [vmem:[#allocation4 + $0x1c0] sm:$0x1] %vm333, 0.0
          %389 = vst.msk [vmem:[#allocation4 + $0x1c8] sm:$0xff] %vm298, 0.0
          %390 = vst.msk [vmem:[#allocation4 + $0x1d0] sm:$0xff] %vm298, 0.0
          %391 = vst.msk [vmem:[#allocation4 + $0x1d8] sm:$0x1] %vm333, 0.0
        $region56: #{basic_block_forward.1} parent=39 // pred_fallthru
          _
        %v392 = vld [vmem:[%s256] sm:$0xff]
        %v393 = vld [vmem:[%s256 + $0x8] sm:$0xff]
        %v394 = vld [vmem:[%s256 + $0x10] sm:$0xff]
        %v395 = vld [vmem:[%s256 + $0x18] sm:$0xff]
        %v396 = vld [vmem:[%s256 + $0x20] sm:$0xff]
        %v397 = vld [vmem:[%s256 + $0x28] sm:$0xff]
        %v398 = vld [vmem:[%s256 + $0x30] sm:$0xff]
        %v399 = vld [vmem:[%s256 + $0x38] sm:$0xff]
        %v400 = vld [vmem:[%s256 + $0x40] sm:$0xff]
        %v401 = vld [vmem:[%s256 + $0x48] sm:$0xff]
        %v402 = vld [vmem:[%s256 + $0x50] sm:$0xff]
        %v403 = vld [vmem:[%s256 + $0x58] sm:$0xff]
        %v404 = vld [vmem:[%s256 + $0x60] sm:$0xff]
        %v405 = vld [vmem:[%s256 + $0x68] sm:$0xff]
        %v406 = vld [vmem:[%s256 + $0x70] sm:$0xff]
        %v407 = vld [vmem:[%s256 + $0x78] sm:$0xff]
        %v408 = vld [vmem:[#allocation2] sm:$0xff]
        %v409 = vld [vmem:[#allocation2 + $0x8] sm:$0xff]
        %v410 = vld [vmem:[#allocation2 + $0x10] sm:$0xff]
        %v411 = vld [vmem:[#allocation2 + $0x18] sm:$0xff]
        %v412 = vld [vmem:[#allocation2 + $0x20] sm:$0xff]
        %v413 = vld [vmem:[#allocation2 + $0x28] sm:$0xff]
        %v414 = vld [vmem:[#allocation2 + $0x30] sm:$0xff]
        %v415 = vld [vmem:[#allocation2 + $0x38] sm:$0xff]
        %v416 = vld [vmem:[#allocation2 + $0x40] sm:$0xff]
        %v417 = vld [vmem:[#allocation2 + $0x48] sm:$0xff]
        %v418 = vld [vmem:[#allocation2 + $0x50] sm:$0xff]
        %v419 = vld [vmem:[#allocation2 + $0x58] sm:$0xff]
        %v420 = vld [vmem:[#allocation2 + $0x60] sm:$0xff]
        %v421 = vld [vmem:[#allocation2 + $0x68] sm:$0xff]
        %v422 = vld [vmem:[#allocation2 + $0x70] sm:$0xff]
        %v423 = vld [vmem:[#allocation2 + $0x78] sm:$0xff]
        %v424 = vsub.f32 %v392, %v408
        %v425 = vsub.f32 %v393, %v409
        %v426 = vsub.f32 %v394, %v410
        %v427 = vsub.f32 %v395, %v411
        %v428 = vsub.f32 %v396, %v412
        %v429 = vsub.f32 %v397, %v413
        %v430 = vsub.f32 %v398, %v414
        %v431 = vsub.f32 %v399, %v415
        %v432 = vsub.f32 %v400, %v416
        %v433 = vsub.f32 %v401, %v417
        %v434 = vsub.f32 %v402, %v418
        %v435 = vsub.f32 %v403, %v419
        %v436 = vsub.f32 %v404, %v420
        %v437 = vsub.f32 %v405, %v421
        %v438 = vsub.f32 %v406, %v422
        %v439 = vsub.f32 %v407, %v423
        %v440 = vmul.f32 %v424, 0.6666667
        %v441 = vmul.f32 %v425, 0.6666667
        %v442 = vmul.f32 %v426, 0.6666667
        %v443 = vmul.f32 %v427, 0.6666667
        %v444 = vmul.f32 %v428, 0.6666667
        %v445 = vmul.f32 %v429, 0.6666667
        %v446 = vmul.f32 %v430, 0.6666667
        %v447 = vmul.f32 %v431, 0.6666667
        %v448 = vmul.f32 %v432, 0.6666667
        %v449 = vmul.f32 %v433, 0.6666667
        %v450 = vmul.f32 %v434, 0.6666667
        %v451 = vmul.f32 %v435, 0.6666667
        %v452 = vmul.f32 %v436, 0.6666667
        %v453 = vmul.f32 %v437, 0.6666667
        %v454 = vmul.f32 %v438, 0.6666667
        %v455 = vmul.f32 %v439, 0.6666667
        %v456 = vadd.f32 %v408, %v440
        %v457 = vadd.f32 %v409, %v441
        %v458 = vadd.f32 %v410, %v442
        %v459 = vadd.f32 %v411, %v443
        %v460 = vadd.f32 %v412, %v444
        %v461 = vadd.f32 %v413, %v445
        %v462 = vadd.f32 %v414, %v446
        %v463 = vadd.f32 %v415, %v447
        %v464 = vadd.f32 %v416, %v448
        %v465 = vadd.f32 %v417, %v449
        %v466 = vadd.f32 %v418, %v450
        %v467 = vadd.f32 %v419, %v451
        %v468 = vadd.f32 %v420, %v452
        %v469 = vadd.f32 %v421, %v453
        %v470 = vadd.f32 %v422, %v454
        %v471 = vadd.f32 %v423, %v455
        %vm472 = vcmp.ge.f32.partialorder %v456, 1.0
        %vm473 = vcmp.ge.f32.partialorder %v457, 1.0
        %vm474 = vcmp.ge.f32.partialorder %v458, 1.0
        %vm475 = vcmp.ge.f32.partialorder %v459, 1.0
        %vm476 = vcmp.ge.f32.partialorder %v460, 1.0
        %vm477 = vcmp.ge.f32.partialorder %v461, 1.0
        %vm478 = vcmp.ge.f32.partialorder %v462, 1.0
        %vm479 = vcmp.ge.f32.partialorder %v463, 1.0
        %vm480 = vcmp.ge.f32.partialorder %v464, 1.0
        %vm481 = vcmp.ge.f32.partialorder %v465, 1.0
        %vm482 = vcmp.ge.f32.partialorder %v466, 1.0
        %vm483 = vcmp.ge.f32.partialorder %v467, 1.0
        %vm484 = vcmp.ge.f32.partialorder %v468, 1.0
        %vm485 = vcmp.ge.f32.partialorder %v469, 1.0
        %vm486 = vcmp.ge.f32.partialorder %v470, 1.0
        %vm487 = vcmp.ge.f32.partialorder %v471, 1.0
        %v488 = vsel %vm472, 0.0, %v456
        %v489 = vsel %vm473, 0.0, %v457
        %v490 = vsel %vm474, 0.0, %v458
        %v491 = vsel %vm475, 0.0, %v459
        %v492 = vsel %vm476, 0.0, %v460
        %v493 = vsel %vm477, 0.0, %v461
        %v494 = vsel %vm478, 0.0, %v462
        %v495 = vsel %vm479, 0.0, %v463
        %v496 = vsel %vm480, 0.0, %v464
        %v497 = vsel %vm481, 0.0, %v465
        %v498 = vsel %vm482, 0.0, %v466
        %v499 = vsel %vm483, 0.0, %v467
        %v500 = vsel %vm484, 0.0, %v468
        %v501 = vsel %vm485, 0.0, %v469
        %v502 = vsel %vm486, 0.0, %v470
        %v503 = vsel %vm487, 0.0, %v471
        %vm504 = vcmask 130048
        %505 = vst.msk [vmem:[#allocation2] sm:$0xff] %vm504, %v488
        %506 = vst.msk [vmem:[#allocation2 + $0x8] sm:$0xff] %vm504, %v489
        %507 = vst.msk [vmem:[#allocation2 + $0x10] sm:$0xff] %vm504, %v490
        %508 = vst.msk [vmem:[#allocation2 + $0x18] sm:$0xff] %vm504, %v491
        %509 = vst.msk [vmem:[#allocation2 + $0x20] sm:$0xff] %vm504, %v492
        %510 = vst.msk [vmem:[#allocation2 + $0x28] sm:$0xff] %vm504, %v493
        %511 = vst.msk [vmem:[#allocation2 + $0x30] sm:$0xff] %vm504, %v494
        %512 = vst.msk [vmem:[#allocation2 + $0x38] sm:$0xff] %vm504, %v495
        %513 = vst.msk [vmem:[#allocation2 + $0x40] sm:$0xff] %vm504, %v496
        %514 = vst.msk [vmem:[#allocation2 + $0x48] sm:$0xff] %vm504, %v497
        %515 = vst.msk [vmem:[#allocation2 + $0x50] sm:$0xff] %vm504, %v498
        %516 = vst.msk [vmem:[#allocation2 + $0x58] sm:$0xff] %vm504, %v499
        %517 = vst.msk [vmem:[#allocation2 + $0x60] sm:$0xff] %vm504, %v500
        %518 = vst.msk [vmem:[#allocation2 + $0x68] sm:$0xff] %vm504, %v501
        %519 = vst.msk [vmem:[#allocation2 + $0x70] sm:$0xff] %vm504, %v502
        %520 = vst.msk [vmem:[#allocation2 + $0x78] sm:$0xff] %vm504, %v503
        %v521 = vsel %vm472, 1, 0
        %v522 = vsel %vm473, 1, 0
        %v523 = vsel %vm474, 1, 0
        %v524 = vsel %vm475, 1, 0
        %v525 = vsel %vm476, 1, 0
        %v526 = vsel %vm477, 1, 0
        %v527 = vsel %vm478, 1, 0
        %v528 = vsel %vm479, 1, 0
        %v529 = vsel %vm480, 1, 0
        %v530 = vsel %vm481, 1, 0
        %v531 = vsel %vm482, 1, 0
        %v532 = vsel %vm483, 1, 0
        %v533 = vsel %vm484, 1, 0
        %v534 = vsel %vm485, 1, 0
        %v535 = vsel %vm486, 1, 0
        %v536 = vsel %vm487, 1, 0
        %v537 = vcvt.s32.f32 %v521
        %v538 = vcvt.s32.f32 %v522
        %v539 = vcvt.s32.f32 %v523
        %v540 = vcvt.s32.f32 %v524
        %v541 = vcvt.s32.f32 %v525
        %v542 = vcvt.s32.f32 %v526
        %v543 = vcvt.s32.f32 %v527
        %v544 = vcvt.s32.f32 %v528
        %v545 = vcvt.s32.f32 %v529
        %v546 = vcvt.s32.f32 %v530
        %v547 = vcvt.s32.f32 %v531
        %v548 = vcvt.s32.f32 %v532
        %v549 = vcvt.s32.f32 %v533
        %v550 = vcvt.s32.f32 %v534
        %v551 = vcvt.s32.f32 %v535
        %v552 = vcvt.s32.f32 %v536
        %s553 = scalar_lea.vmem [#allocation4], 24
        %554 = vst.msk [vmem:[%s553 + $0x8] sm:$0xff] %vm504, %v537
        %555 = vst.msk [vmem:[%s553 + $0x20] sm:$0xff] %vm504, %v538
        %556 = vst.msk [vmem:[%s553 + $0x38] sm:$0xff] %vm504, %v539
        %557 = vst.msk [vmem:[%s553 + $0x50] sm:$0xff] %vm504, %v540
        %558 = vst.msk [vmem:[%s553 + $0x68] sm:$0xff] %vm504, %v541
        %559 = vst.msk [vmem:[%s553 + $0x80] sm:$0xff] %vm504, %v542
        %560 = vst.msk [vmem:[%s553 + $0x98] sm:$0xff] %vm504, %v543
        %561 = vst.msk [vmem:[%s553 + $0xb0] sm:$0xff] %vm504, %v544
        %562 = vst.msk [vmem:[%s553 + $0xf8] sm:$0xff] %vm504, %v545
        %563 = vst.msk [vmem:[%s553 + $0x110] sm:$0xff] %vm504, %v546
        %564 = vst.msk [vmem:[%s553 + $0x128] sm:$0xff] %vm504, %v547
        %565 = vst.msk [vmem:[%s553 + $0x140] sm:$0xff] %vm504, %v548
        %566 = vst.msk [vmem:[%s553 + $0x158] sm:$0xff] %vm504, %v549
        %567 = vst.msk [vmem:[%s553 + $0x170] sm:$0xff] %vm504, %v550
        %568 = vst.msk [vmem:[%s553 + $0x188] sm:$0xff] %vm504, %v551
        %569 = vst.msk [vmem:[%s553 + $0x1a0] sm:$0xff] %vm504, %v552
        %v570 = vld [vmem:[#allocation4 + $0x7] sm:$0xff]
        %v571 = vld [vmem:[#allocation4 + $0x1f] sm:$0xff]
        %v572 = vld [vmem:[#allocation4 + $0x37] sm:$0xff]
        %v573 = vld [vmem:[#allocation4 + $0x4f] sm:$0xff]
        %v574 = vld [vmem:[#allocation4 + $0x67] sm:$0xff]
        %v575 = vld [vmem:[#allocation4 + $0x7f] sm:$0xff]
        %v576 = vld [vmem:[#allocation4 + $0x97] sm:$0xff]
        %v577 = vld [vmem:[#allocation4 + $0xaf] sm:$0xff]
        %v578 = vld [vmem:[#allocation4 + $0xf7] sm:$0xff]
        %v579 = vld [vmem:[#allocation4 + $0x10f] sm:$0xff]
        %v580 = vld [vmem:[#allocation4 + $0x127] sm:$0xff]
        %v581 = vld [vmem:[#allocation4 + $0x13f] sm:$0xff]
        %v582 = vld [vmem:[#allocation4 + $0x157] sm:$0xff]
        %v583 = vld [vmem:[#allocation4 + $0x16f] sm:$0xff]
        %v584 = vld [vmem:[#allocation4 + $0x187] sm:$0xff]
        %v585 = vld [vmem:[#allocation4 + $0x19f] sm:$0xff]
        %v586 = vld [vmem:[#allocation4 + $0x8] sm:$0xff]
        %v587 = vld [vmem:[#allocation4 + $0x20] sm:$0xff]
        %v588 = vld [vmem:[#allocation4 + $0x38] sm:$0xff]
        %v589 = vld [vmem:[#allocation4 + $0x50] sm:$0xff]
        %v590 = vld [vmem:[#allocation4 + $0x68] sm:$0xff]
        %v591 = vld [vmem:[#allocation4 + $0x80] sm:$0xff]
        %v592 = vld [vmem:[#allocation4 + $0x98] sm:$0xff]
        %v593 = vld [vmem:[#allocation4 + $0xb0] sm:$0xff]
        %v594 = vld [vmem:[#allocation4 + $0xf8] sm:$0xff]
        %v595 = vld [vmem:[#allocation4 + $0x110] sm:$0xff]
        %v596 = vld [vmem:[#allocation4 + $0x128] sm:$0xff]
        %v597 = vld [vmem:[#allocation4 + $0x140] sm:$0xff]
        %v598 = vld [vmem:[#allocation4 + $0x158] sm:$0xff]
        %v599 = vld [vmem:[#allocation4 + $0x170] sm:$0xff]
        %v600 = vld [vmem:[#allocation4 + $0x188] sm:$0xff]
        %v601 = vld [vmem:[#allocation4 + $0x1a0] sm:$0xff]
        %v602 = vld [vmem:[#allocation4 + $0x9] sm:$0xff]
        %v603 = vld [vmem:[#allocation4 + $0x21] sm:$0xff]
        %v604 = vld [vmem:[#allocation4 + $0x39] sm:$0xff]
        %v605 = vld [vmem:[#allocation4 + $0x51] sm:$0xff]
        %v606 = vld [vmem:[#allocation4 + $0x69] sm:$0xff]
        %v607 = vld [vmem:[#allocation4 + $0x81] sm:$0xff]
        %v608 = vld [vmem:[#allocation4 + $0x99] sm:$0xff]
        %v609 = vld [vmem:[#allocation4 + $0xb1] sm:$0xff]
        %v610 = vld [vmem:[#allocation4 + $0xf9] sm:$0xff]
        %v611 = vld [vmem:[#allocation4 + $0x111] sm:$0xff]
        %v612 = vld [vmem:[#allocation4 + $0x129] sm:$0xff]
        %v613 = vld [vmem:[#allocation4 + $0x141] sm:$0xff]
        %v614 = vld [vmem:[#allocation4 + $0x159] sm:$0xff]
        %v615 = vld [vmem:[#allocation4 + $0x171] sm:$0xff]
        %v616 = vld [vmem:[#allocation4 + $0x189] sm:$0xff]
        %v617 = vld [vmem:[#allocation4 + $0x1a1] sm:$0xff]
        %v618 = vld [vmem:[%s553 + $0x7] sm:$0xff]
        %v619 = vld [vmem:[%s553 + $0x1f] sm:$0xff]
        %v620 = vld [vmem:[%s553 + $0x37] sm:$0xff]
        %v621 = vld [vmem:[%s553 + $0x4f] sm:$0xff]
        %v622 = vld [vmem:[%s553 + $0x67] sm:$0xff]
        %v623 = vld [vmem:[%s553 + $0x7f] sm:$0xff]
        %v624 = vld [vmem:[%s553 + $0x97] sm:$0xff]
        %v625 = vld [vmem:[%s553 + $0xaf] sm:$0xff]
        %v626 = vld [vmem:[%s553 + $0xf7] sm:$0xff]
        %v627 = vld [vmem:[%s553 + $0x10f] sm:$0xff]
        %v628 = vld [vmem:[%s553 + $0x127] sm:$0xff]
        %v629 = vld [vmem:[%s553 + $0x13f] sm:$0xff]
        %v630 = vld [vmem:[%s553 + $0x157] sm:$0xff]
        %v631 = vld [vmem:[%s553 + $0x16f] sm:$0xff]
        %v632 = vld [vmem:[%s553 + $0x187] sm:$0xff]
        %v633 = vld [vmem:[%s553 + $0x19f] sm:$0xff]
        %v634 = vld [vmem:[%s553 + $0x8] sm:$0xff]
        %v635 = vld [vmem:[%s553 + $0x20] sm:$0xff]
        %v636 = vld [vmem:[%s553 + $0x38] sm:$0xff]
        %v637 = vld [vmem:[%s553 + $0x50] sm:$0xff]
        %v638 = vld [vmem:[%s553 + $0x68] sm:$0xff]
        %v639 = vld [vmem:[%s553 + $0x80] sm:$0xff]
        %v640 = vld [vmem:[%s553 + $0x98] sm:$0xff]
        %v641 = vld [vmem:[%s553 + $0xb0] sm:$0xff]
        %v642 = vld [vmem:[%s553 + $0xf8] sm:$0xff]
        %v643 = vld [vmem:[%s553 + $0x110] sm:$0xff]
        %v644 = vld [vmem:[%s553 + $0x128] sm:$0xff]
        %v645 = vld [vmem:[%s553 + $0x140] sm:$0xff]
        %v646 = vld [vmem:[%s553 + $0x158] sm:$0xff]
        %v647 = vld [vmem:[%s553 + $0x170] sm:$0xff]
        %v648 = vld [vmem:[%s553 + $0x188] sm:$0xff]
        %v649 = vld [vmem:[%s553 + $0x1a0] sm:$0xff]
        %v650 = vld [vmem:[%s553 + $0x9] sm:$0xff]
        %v651 = vld [vmem:[%s553 + $0x21] sm:$0xff]
        %v652 = vld [vmem:[%s553 + $0x39] sm:$0xff]
        %v653 = vld [vmem:[%s553 + $0x51] sm:$0xff]
        %v654 = vld [vmem:[%s553 + $0x69] sm:$0xff]
        %v655 = vld [vmem:[%s553 + $0x81] sm:$0xff]
        %v656 = vld [vmem:[%s553 + $0x99] sm:$0xff]
        %v657 = vld [vmem:[%s553 + $0xb1] sm:$0xff]
        %v658 = vld [vmem:[%s553 + $0xf9] sm:$0xff]
        %v659 = vld [vmem:[%s553 + $0x111] sm:$0xff]
        %v660 = vld [vmem:[%s553 + $0x129] sm:$0xff]
        %v661 = vld [vmem:[%s553 + $0x141] sm:$0xff]
        %v662 = vld [vmem:[%s553 + $0x159] sm:$0xff]
        %v663 = vld [vmem:[%s553 + $0x171] sm:$0xff]
        %v664 = vld [vmem:[%s553 + $0x189] sm:$0xff]
        %v665 = vld [vmem:[%s553 + $0x1a1] sm:$0xff]
        %s666 = scalar_lea.vmem [#allocation4], 48
        %v667 = vld [vmem:[%s666 + $0x7] sm:$0xff]
        %v668 = vld [vmem:[%s666 + $0x1f] sm:$0xff]
        %v669 = vld [vmem:[%s666 + $0x37] sm:$0xff]
        %v670 = vld [vmem:[%s666 + $0x4f] sm:$0xff]
        %v671 = vld [vmem:[%s666 + $0x67] sm:$0xff]
        %v672 = vld [vmem:[%s666 + $0x7f] sm:$0xff]
        %v673 = vld [vmem:[%s666 + $0x97] sm:$0xff]
        %v674 = vld [vmem:[%s666 + $0xaf] sm:$0xff]
        %v675 = vld [vmem:[%s666 + $0xf7] sm:$0xff]
        %v676 = vld [vmem:[%s666 + $0x10f] sm:$0xff]
        %v677 = vld [vmem:[%s666 + $0x127] sm:$0xff]
        %v678 = vld [vmem:[%s666 + $0x13f] sm:$0xff]
        %v679 = vld [vmem:[%s666 + $0x157] sm:$0xff]
        %v680 = vld [vmem:[%s666 + $0x16f] sm:$0xff]
        %v681 = vld [vmem:[%s666 + $0x187] sm:$0xff]
        %v682 = vld [vmem:[%s666 + $0x19f] sm:$0xff]
        %v683 = vld [vmem:[%s666 + $0x8] sm:$0xff]
        %v684 = vld [vmem:[%s666 + $0x20] sm:$0xff]
        %v685 = vld [vmem:[%s666 + $0x38] sm:$0xff]
        %v686 = vld [vmem:[%s666 + $0x50] sm:$0xff]
        %v687 = vld [vmem:[%s666 + $0x68] sm:$0xff]
        %v688 = vld [vmem:[%s666 + $0x80] sm:$0xff]
        %v689 = vld [vmem:[%s666 + $0x98] sm:$0xff]
        %v690 = vld [vmem:[%s666 + $0xb0] sm:$0xff]
        %v691 = vld [vmem:[%s666 + $0xf8] sm:$0xff]
        %v692 = vld [vmem:[%s666 + $0x110] sm:$0xff]
        %v693 = vld [vmem:[%s666 + $0x128] sm:$0xff]
        %v694 = vld [vmem:[%s666 + $0x140] sm:$0xff]
        %v695 = vld [vmem:[%s666 + $0x158] sm:$0xff]
        %v696 = vld [vmem:[%s666 + $0x170] sm:$0xff]
        %v697 = vld [vmem:[%s666 + $0x188] sm:$0xff]
        %v698 = vld [vmem:[%s666 + $0x1a0] sm:$0xff]
        %v699 = vld [vmem:[%s666 + $0x9] sm:$0xff]
        %v700 = vld [vmem:[%s666 + $0x21] sm:$0xff]
        %v701 = vld [vmem:[%s666 + $0x39] sm:$0xff]
        %v702 = vld [vmem:[%s666 + $0x51] sm:$0xff]
        %v703 = vld [vmem:[%s666 + $0x69] sm:$0xff]
        %v704 = vld [vmem:[%s666 + $0x81] sm:$0xff]
        %v705 = vld [vmem:[%s666 + $0x99] sm:$0xff]
        %v706 = vld [vmem:[%s666 + $0xb1] sm:$0xff]
        %v707 = vld [vmem:[%s666 + $0xf9] sm:$0xff]
        %v708 = vld [vmem:[%s666 + $0x111] sm:$0xff]
        %v709 = vld [vmem:[%s666 + $0x129] sm:$0xff]
        %v710 = vld [vmem:[%s666 + $0x141] sm:$0xff]
        %v711 = vld [vmem:[%s666 + $0x159] sm:$0xff]
        %v712 = vld [vmem:[%s666 + $0x171] sm:$0xff]
        %v713 = vld [vmem:[%s666 + $0x189] sm:$0xff]
        %v714 = vld [vmem:[%s666 + $0x1a1] sm:$0xff]
        %731 = vrot.lane.b32.xlu0 %v586, 16
        %v732 = vpop.permute.xlu0 %731
        %733 = vrot.lane.b32.xlu0 %v587, 16
        %v734 = vpop.permute.xlu0 %733
        %735 = vrot.lane.b32.xlu0 %v588, 16
        %v736 = vpop.permute.xlu0 %735
        %737 = vrot.lane.b32.xlu0 %v589, 16
        %v738 = vpop.permute.xlu0 %737
        %739 = vrot.lane.b32.xlu0 %v590, 16
        %v740 = vpop.permute.xlu0 %739
        %741 = vrot.lane.b32.xlu0 %v591, 16
        %v742 = vpop.permute.xlu0 %741
        %743 = vrot.lane.b32.xlu0 %v592, 16
        %v744 = vpop.permute.xlu0 %743
        %745 = vrot.lane.b32.xlu0 %v593, 16
        %v746 = vpop.permute.xlu0 %745
        %747 = vrot.lane.b32.xlu0 %v594, 16
        %v748 = vpop.permute.xlu0 %747
        %749 = vrot.lane.b32.xlu0 %v595, 16
        %v750 = vpop.permute.xlu0 %749
        %751 = vrot.lane.b32.xlu0 %v596, 16
        %v752 = vpop.permute.xlu0 %751
        %753 = vrot.lane.b32.xlu0 %v597, 16
        %v754 = vpop.permute.xlu0 %753
        %755 = vrot.lane.b32.xlu0 %v598, 16
        %v756 = vpop.permute.xlu0 %755
        %757 = vrot.lane.b32.xlu0 %v599, 16
        %v758 = vpop.permute.xlu0 %757
        %759 = vrot.lane.b32.xlu0 %v600, 16
        %v760 = vpop.permute.xlu0 %759
        %761 = vrot.lane.b32.xlu0 %v601, 16
        %v762 = vpop.permute.xlu0 %761
        %795 = vrot.lane.b32.xlu0 %v602, 32
        %v796 = vpop.permute.xlu0 %795
        %797 = vrot.lane.b32.xlu0 %v603, 32
        %v798 = vpop.permute.xlu0 %797
        %799 = vrot.lane.b32.xlu0 %v604, 32
        %v800 = vpop.permute.xlu0 %799
        %801 = vrot.lane.b32.xlu0 %v605, 32
        %v802 = vpop.permute.xlu0 %801
        %803 = vrot.lane.b32.xlu0 %v606, 32
        %v804 = vpop.permute.xlu0 %803
        %805 = vrot.lane.b32.xlu0 %v607, 32
        %v806 = vpop.permute.xlu0 %805
        %807 = vrot.lane.b32.xlu0 %v608, 32
        %v808 = vpop.permute.xlu0 %807
        %809 = vrot.lane.b32.xlu0 %v609, 32
        %v810 = vpop.permute.xlu0 %809
        %811 = vrot.lane.b32.xlu0 %v610, 32
        %v812 = vpop.permute.xlu0 %811
        %813 = vrot.lane.b32.xlu0 %v611, 32
        %v814 = vpop.permute.xlu0 %813
        %815 = vrot.lane.b32.xlu0 %v612, 32
        %v816 = vpop.permute.xlu0 %815
        %817 = vrot.lane.b32.xlu0 %v613, 32
        %v818 = vpop.permute.xlu0 %817
        %819 = vrot.lane.b32.xlu0 %v614, 32
        %v820 = vpop.permute.xlu0 %819
        %821 = vrot.lane.b32.xlu0 %v615, 32
        %v822 = vpop.permute.xlu0 %821
        %823 = vrot.lane.b32.xlu0 %v616, 32
        %v824 = vpop.permute.xlu0 %823
        %825 = vrot.lane.b32.xlu0 %v617, 32
        %v826 = vpop.permute.xlu0 %825
        %859 = vrot.lane.b32.xlu0 %v618, 48
        %v860 = vpop.permute.xlu0 %859
        %861 = vrot.lane.b32.xlu0 %v619, 48
        %v862 = vpop.permute.xlu0 %861
        %863 = vrot.lane.b32.xlu0 %v620, 48
        %v864 = vpop.permute.xlu0 %863
        %865 = vrot.lane.b32.xlu0 %v621, 48
        %v866 = vpop.permute.xlu0 %865
        %867 = vrot.lane.b32.xlu0 %v622, 48
        %v868 = vpop.permute.xlu0 %867
        %869 = vrot.lane.b32.xlu0 %v623, 48
        %v870 = vpop.permute.xlu0 %869
        %871 = vrot.lane.b32.xlu0 %v624, 48
        %v872 = vpop.permute.xlu0 %871
        %873 = vrot.lane.b32.xlu0 %v625, 48
        %v874 = vpop.permute.xlu0 %873
        %875 = vrot.lane.b32.xlu0 %v626, 48
        %v876 = vpop.permute.xlu0 %875
        %877 = vrot.lane.b32.xlu0 %v627, 48
        %v878 = vpop.permute.xlu0 %877
        %879 = vrot.lane.b32.xlu0 %v628, 48
        %v880 = vpop.permute.xlu0 %879
        %881 = vrot.lane.b32.xlu0 %v629, 48
        %v882 = vpop.permute.xlu0 %881
        %883 = vrot.lane.b32.xlu0 %v630, 48
        %v884 = vpop.permute.xlu0 %883
        %885 = vrot.lane.b32.xlu0 %v631, 48
        %v886 = vpop.permute.xlu0 %885
        %887 = vrot.lane.b32.xlu0 %v632, 48
        %v888 = vpop.permute.xlu0 %887
        %889 = vrot.lane.b32.xlu0 %v633, 48
        %v890 = vpop.permute.xlu0 %889
        %923 = vrot.lane.b32.xlu0 %v634, 64
        %v924 = vpop.permute.xlu0 %923
        %925 = vrot.lane.b32.xlu0 %v635, 64
        %v926 = vpop.permute.xlu0 %925
        %927 = vrot.lane.b32.xlu0 %v636, 64
        %v928 = vpop.permute.xlu0 %927
        %929 = vrot.lane.b32.xlu0 %v637, 64
        %v930 = vpop.permute.xlu0 %929
        %931 = vrot.lane.b32.xlu0 %v638, 64
        %v932 = vpop.permute.xlu0 %931
        %933 = vrot.lane.b32.xlu0 %v639, 64
        %v934 = vpop.permute.xlu0 %933
        %935 = vrot.lane.b32.xlu0 %v640, 64
        %v936 = vpop.permute.xlu0 %935
        %937 = vrot.lane.b32.xlu0 %v641, 64
        %v938 = vpop.permute.xlu0 %937
        %939 = vrot.lane.b32.xlu0 %v642, 64
        %v940 = vpop.permute.xlu0 %939
        %941 = vrot.lane.b32.xlu0 %v643, 64
        %v942 = vpop.permute.xlu0 %941
        %943 = vrot.lane.b32.xlu0 %v644, 64
        %v944 = vpop.permute.xlu0 %943
        %945 = vrot.lane.b32.xlu0 %v645, 64
        %v946 = vpop.permute.xlu0 %945
        %947 = vrot.lane.b32.xlu0 %v646, 64
        %v948 = vpop.permute.xlu0 %947
        %949 = vrot.lane.b32.xlu0 %v647, 64
        %v950 = vpop.permute.xlu0 %949
        %951 = vrot.lane.b32.xlu0 %v648, 64
        %v952 = vpop.permute.xlu0 %951
        %953 = vrot.lane.b32.xlu0 %v649, 64
        %v954 = vpop.permute.xlu0 %953
        %987 = vrot.lane.b32.xlu0 %v650, 80
        %v988 = vpop.permute.xlu0 %987
        %989 = vrot.lane.b32.xlu0 %v651, 80
        %v990 = vpop.permute.xlu0 %989
        %991 = vrot.lane.b32.xlu0 %v652, 80
        %v992 = vpop.permute.xlu0 %991
        %993 = vrot.lane.b32.xlu0 %v653, 80
        %v994 = vpop.permute.xlu0 %993
        %995 = vrot.lane.b32.xlu0 %v654, 80
        %v996 = vpop.permute.xlu0 %995
        %997 = vrot.lane.b32.xlu0 %v655, 80
        %v998 = vpop.permute.xlu0 %997
        %999 = vrot.lane.b32.xlu0 %v656, 80
        %v1000 = vpop.permute.xlu0 %999
        %1001 = vrot.lane.b32.xlu0 %v657, 80
        %v1002 = vpop.permute.xlu0 %1001
        %1003 = vrot.lane.b32.xlu0 %v658, 80
        %v1004 = vpop.permute.xlu0 %1003
        %1005 = vrot.lane.b32.xlu0 %v659, 80
        %v1006 = vpop.permute.xlu0 %1005
        %1007 = vrot.lane.b32.xlu0 %v660, 80
        %v1008 = vpop.permute.xlu0 %1007
        %1009 = vrot.lane.b32.xlu0 %v661, 80
        %v1010 = vpop.permute.xlu0 %1009
        %1011 = vrot.lane.b32.xlu0 %v662, 80
        %v1012 = vpop.permute.xlu0 %1011
        %1013 = vrot.lane.b32.xlu0 %v663, 80
        %v1014 = vpop.permute.xlu0 %1013
        %1015 = vrot.lane.b32.xlu0 %v664, 80
        %v1016 = vpop.permute.xlu0 %1015
        %1017 = vrot.lane.b32.xlu0 %v665, 80
        %v1018 = vpop.permute.xlu0 %1017
        %1051 = vrot.lane.b32.xlu0 %v667, 96
        %v1052 = vpop.permute.xlu0 %1051
        %1053 = vrot.lane.b32.xlu0 %v668, 96
        %v1054 = vpop.permute.xlu0 %1053
        %1055 = vrot.lane.b32.xlu0 %v669, 96
        %v1056 = vpop.permute.xlu0 %1055
        %1057 = vrot.lane.b32.xlu0 %v670, 96
        %v1058 = vpop.permute.xlu0 %1057
        %1059 = vrot.lane.b32.xlu0 %v671, 96
        %v1060 = vpop.permute.xlu0 %1059
        %1061 = vrot.lane.b32.xlu0 %v672, 96
        %v1062 = vpop.permute.xlu0 %1061
        %1063 = vrot.lane.b32.xlu0 %v673, 96
        %v1064 = vpop.permute.xlu0 %1063
        %1065 = vrot.lane.b32.xlu0 %v674, 96
        %v1066 = vpop.permute.xlu0 %1065
        %1067 = vrot.lane.b32.xlu0 %v675, 96
        %v1068 = vpop.permute.xlu0 %1067
        %1069 = vrot.lane.b32.xlu0 %v676, 96
        %v1070 = vpop.permute.xlu0 %1069
        %1071 = vrot.lane.b32.xlu0 %v677, 96
        %v1072 = vpop.permute.xlu0 %1071
        %1073 = vrot.lane.b32.xlu0 %v678, 96
        %v1074 = vpop.permute.xlu0 %1073
        %1075 = vrot.lane.b32.xlu0 %v679, 96
        %v1076 = vpop.permute.xlu0 %1075
        %1077 = vrot.lane.b32.xlu0 %v680, 96
        %v1078 = vpop.permute.xlu0 %1077
        %1079 = vrot.lane.b32.xlu0 %v681, 96
        %v1080 = vpop.permute.xlu0 %1079
        %1081 = vrot.lane.b32.xlu0 %v682, 96
        %v1082 = vpop.permute.xlu0 %1081
        %1115 = vrot.lane.b32.xlu0 %v683, 112
        %v1116 = vpop.permute.xlu0 %1115
        %1117 = vrot.lane.b32.xlu0 %v684, 112
        %v1118 = vpop.permute.xlu0 %1117
        %1119 = vrot.lane.b32.xlu0 %v685, 112
        %v1120 = vpop.permute.xlu0 %1119
        %1121 = vrot.lane.b32.xlu0 %v686, 112
        %v1122 = vpop.permute.xlu0 %1121
        %1123 = vrot.lane.b32.xlu0 %v687, 112
        %v1124 = vpop.permute.xlu0 %1123
        %1125 = vrot.lane.b32.xlu0 %v688, 112
        %v1126 = vpop.permute.xlu0 %1125
        %1127 = vrot.lane.b32.xlu0 %v689, 112
        %v1128 = vpop.permute.xlu0 %1127
        %1129 = vrot.lane.b32.xlu0 %v690, 112
        %v1130 = vpop.permute.xlu0 %1129
        %1131 = vrot.lane.b32.xlu0 %v691, 112
        %v1132 = vpop.permute.xlu0 %1131
        %1133 = vrot.lane.b32.xlu0 %v692, 112
        %v1134 = vpop.permute.xlu0 %1133
        %1135 = vrot.lane.b32.xlu0 %v693, 112
        %v1136 = vpop.permute.xlu0 %1135
        %1137 = vrot.lane.b32.xlu0 %v694, 112
        %v1138 = vpop.permute.xlu0 %1137
        %1139 = vrot.lane.b32.xlu0 %v695, 112
        %v1140 = vpop.permute.xlu0 %1139
        %1141 = vrot.lane.b32.xlu0 %v696, 112
        %v1142 = vpop.permute.xlu0 %1141
        %1143 = vrot.lane.b32.xlu0 %v697, 112
        %v1144 = vpop.permute.xlu0 %1143
        %1145 = vrot.lane.b32.xlu0 %v698, 112
        %v1146 = vpop.permute.xlu0 %1145
        %v1163 = vsel %vm504, %v570, %v732
        %v1164 = vsel %vm504, %v571, %v734
        %v1165 = vsel %vm504, %v572, %v736
        %v1166 = vsel %vm504, %v573, %v738
        %v1167 = vsel %vm504, %v574, %v740
        %v1168 = vsel %vm504, %v575, %v742
        %v1169 = vsel %vm504, %v576, %v744
        %v1170 = vsel %vm504, %v577, %v746
        %v1171 = vsel %vm504, %v578, %v748
        %v1172 = vsel %vm504, %v579, %v750
        %v1173 = vsel %vm504, %v580, %v752
        %v1174 = vsel %vm504, %v581, %v754
        %v1175 = vsel %vm504, %v582, %v756
        %v1176 = vsel %vm504, %v583, %v758
        %v1177 = vsel %vm504, %v584, %v760
        %v1178 = vsel %vm504, %v585, %v762
        %vm1179 = vcmask 261120
        %v1180 = vsel %vm1179, %v1163, %v796
        %v1181 = vsel %vm1179, %v1164, %v798
        %v1182 = vsel %vm1179, %v1165, %v800
        %v1183 = vsel %vm1179, %v1166, %v802
        %v1184 = vsel %vm1179, %v1167, %v804
        %v1185 = vsel %vm1179, %v1168, %v806
        %v1186 = vsel %vm1179, %v1169, %v808
        %v1187 = vsel %vm1179, %v1170, %v810
        %v1188 = vsel %vm1179, %v1171, %v812
        %v1189 = vsel %vm1179, %v1172, %v814
        %v1190 = vsel %vm1179, %v1173, %v816
        %v1191 = vsel %vm1179, %v1174, %v818
        %v1192 = vsel %vm1179, %v1175, %v820
        %v1193 = vsel %vm1179, %v1176, %v822
        %v1194 = vsel %vm1179, %v1177, %v824
        %v1195 = vsel %vm1179, %v1178, %v826
        %vm1196 = vcmask 392192
        %v1197 = vsel %vm1196, %v1180, %v860
        %v1198 = vsel %vm1196, %v1181, %v862
        %v1199 = vsel %vm1196, %v1182, %v864
        %v1200 = vsel %vm1196, %v1183, %v866
        %v1201 = vsel %vm1196, %v1184, %v868
        %v1202 = vsel %vm1196, %v1185, %v870
        %v1203 = vsel %vm1196, %v1186, %v872
        %v1204 = vsel %vm1196, %v1187, %v874
        %v1205 = vsel %vm1196, %v1188, %v876
        %v1206 = vsel %vm1196, %v1189, %v878
        %v1207 = vsel %vm1196, %v1190, %v880
        %v1208 = vsel %vm1196, %v1191, %v882
        %v1209 = vsel %vm1196, %v1192, %v884
        %v1210 = vsel %vm1196, %v1193, %v886
        %v1211 = vsel %vm1196, %v1194, %v888
        %v1212 = vsel %vm1196, %v1195, %v890
        %vm1213 = vcmask 523264
        %v1214 = vsel %vm1213, %v1197, %v924
        %v1215 = vsel %vm1213, %v1198, %v926
        %v1216 = vsel %vm1213, %v1199, %v928
        %v1217 = vsel %vm1213, %v1200, %v930
        %v1218 = vsel %vm1213, %v1201, %v932
        %v1219 = vsel %vm1213, %v1202, %v934
        %v1220 = vsel %vm1213, %v1203, %v936
        %v1221 = vsel %vm1213, %v1204, %v938
        %v1222 = vsel %vm1213, %v1205, %v940
        %v1223 = vsel %vm1213, %v1206, %v942
        %v1224 = vsel %vm1213, %v1207, %v944
        %v1225 = vsel %vm1213, %v1208, %v946
        %v1226 = vsel %vm1213, %v1209, %v948
        %v1227 = vsel %vm1213, %v1210, %v950
        %v1228 = vsel %vm1213, %v1211, %v952
        %v1229 = vsel %vm1213, %v1212, %v954
        %vm1230 = vcmask 654336
        %v1231 = vsel %vm1230, %v1214, %v988
        %v1232 = vsel %vm1230, %v1215, %v990
        %v1233 = vsel %vm1230, %v1216, %v992
        %v1234 = vsel %vm1230, %v1217, %v994
        %v1235 = vsel %vm1230, %v1218, %v996
        %v1236 = vsel %vm1230, %v1219, %v998
        %v1237 = vsel %vm1230, %v1220, %v1000
        %v1238 = vsel %vm1230, %v1221, %v1002
        %v1239 = vsel %vm1230, %v1222, %v1004
        %v1240 = vsel %vm1230, %v1223, %v1006
        %v1241 = vsel %vm1230, %v1224, %v1008
        %v1242 = vsel %vm1230, %v1225, %v1010
        %v1243 = vsel %vm1230, %v1226, %v1012
        %v1244 = vsel %vm1230, %v1227, %v1014
        %v1245 = vsel %vm1230, %v1228, %v1016
        %v1246 = vsel %vm1230, %v1229, %v1018
        %vm1247 = vcmask 785408
        %v1248 = vsel %vm1247, %v1231, %v1052
        %v1249 = vsel %vm1247, %v1232, %v1054
        %v1250 = vsel %vm1247, %v1233, %v1056
        %v1251 = vsel %vm1247, %v1234, %v1058
        %v1252 = vsel %vm1247, %v1235, %v1060
        %v1253 = vsel %vm1247, %v1236, %v1062
        %v1254 = vsel %vm1247, %v1237, %v1064
        %v1255 = vsel %vm1247, %v1238, %v1066
        %v1256 = vsel %vm1247, %v1239, %v1068
        %v1257 = vsel %vm1247, %v1240, %v1070
        %v1258 = vsel %vm1247, %v1241, %v1072
        %v1259 = vsel %vm1247, %v1242, %v1074
        %v1260 = vsel %vm1247, %v1243, %v1076
        %v1261 = vsel %vm1247, %v1244, %v1078
        %v1262 = vsel %vm1247, %v1245, %v1080
        %v1263 = vsel %vm1247, %v1246, %v1082
        %vm1264 = vcmask 916480
        %v1265 = vsel %vm1264, %v1248, %v1116
        %v1266 = vsel %vm1264, %v1249, %v1118
        %v1267 = vsel %vm1264, %v1250, %v1120
        %v1268 = vsel %vm1264, %v1251, %v1122
        %v1269 = vsel %vm1264, %v1252, %v1124
        %v1270 = vsel %vm1264, %v1253, %v1126
        %v1271 = vsel %vm1264, %v1254, %v1128
        %v1272 = vsel %vm1264, %v1255, %v1130
        %v1273 = vsel %vm1264, %v1256, %v1132
        %v1274 = vsel %vm1264, %v1257, %v1134
        %v1275 = vsel %vm1264, %v1258, %v1136
        %v1276 = vsel %vm1264, %v1259, %v1138
        %v1277 = vsel %vm1264, %v1260, %v1140
        %v1278 = vsel %vm1264, %v1261, %v1142
        %v1279 = vsel %vm1264, %v1262, %v1144
        %v1280 = vsel %vm1264, %v1263, %v1146
        %v1281 = vpack.c.bf16 %v1266, %v1265
        %v1282 = vpack.c.bf16 %v700, %v699
        %v1283 = vpack.c.bf16 %v1268, %v1267
        %v1284 = vpack.c.bf16 %v702, %v701
        %v1285 = vpack.c.bf16 %v1270, %v1269
        %v1286 = vpack.c.bf16 %v704, %v703
        %v1287 = vpack.c.bf16 %v1272, %v1271
        %v1288 = vpack.c.bf16 %v706, %v705
        %v1289 = vpack.c.bf16 %v1274, %v1273
        %v1290 = vpack.c.bf16 %v708, %v707
        %v1291 = vpack.c.bf16 %v1276, %v1275
        %v1292 = vpack.c.bf16 %v710, %v709
        %v1293 = vpack.c.bf16 %v1278, %v1277
        %v1294 = vpack.c.bf16 %v712, %v711
        %v1295 = vpack.c.bf16 %v1280, %v1279
        %v1296 = vpack.c.bf16 %v714, %v713
        %v1297 = vld [vmem:[#allocation8] sm:$0xf]
        %v1298 = vld [vmem:[#allocation8 + $0x4] sm:$0xf]
        %v1299 = vld [vmem:[#allocation8 + $0x8] sm:$0xf]
        %v1300 = vld [vmem:[#allocation8 + $0xc] sm:$0xf]
        %v1301 = vld [vmem:[#allocation8 + $0x10] sm:$0xf]
        %v1302 = vld [vmem:[#allocation8 + $0x14] sm:$0xf]
        %v1303 = vld [vmem:[#allocation8 + $0x18] sm:$0xf]
        %v1304 = vld [vmem:[#allocation8 + $0x1c] sm:$0xf]
        %v1305 = vld [vmem:[#allocation8 + $0x20] sm:$0xf]
        %v1306 = vld [vmem:[#allocation8 + $0x24] sm:$0xf]
        %v1307 = vld [vmem:[#allocation8 + $0x28] sm:$0xf]
        %v1308 = vld [vmem:[#allocation8 + $0x2c] sm:$0xf]
        %v1309 = vld [vmem:[#allocation8 + $0x30] sm:$0xf]
        %v1310 = vld [vmem:[#allocation8 + $0x34] sm:$0xf]
        %v1311 = vld [vmem:[#allocation8 + $0x38] sm:$0xf]
        %v1312 = vld [vmem:[#allocation8 + $0x3c] sm:$0xf]
        %v1313 = vld [vmem:[#allocation8 + $0x40] sm:$0xf]
        %v1314 = vld [vmem:[#allocation8 + $0x44] sm:$0xf]
        %v1315 = vld [vmem:[%s2] sm:$0x1]
        %v1317 = vlaneseq
        %v1318 = vshrl.u32 %v1317, 7
        %v1319 = vsub.s32 0, %v1318
        %v1320 = vrot.slane %v1315, %v1319
        %v1340 = vunpack.c.l.b16 %v1297
        %v1341 = vunpack.c.l.b16 %v1298
        %v1342 = vunpack.c.l.b16 %v1299
        %v1343 = vunpack.c.l.b16 %v1300
        %v1344 = vunpack.c.l.b16 %v1301
        %v1345 = vunpack.c.l.b16 %v1302
        %v1346 = vunpack.c.l.b16 %v1303
        %v1347 = vunpack.c.l.b16 %v1304
        %v1348 = vunpack.c.l.b16 %v1305
        %v1349 = vunpack.c.l.b16 %v1306
        %v1350 = vunpack.c.l.b16 %v1307
        %v1351 = vunpack.c.l.b16 %v1308
        %v1352 = vunpack.c.l.b16 %v1309
        %v1353 = vunpack.c.l.b16 %v1310
        %v1354 = vunpack.c.l.b16 %v1311
        %v1355 = vunpack.c.l.b16 %v1312
        %v1356 = vunpack.c.l.b16 %v1313
        %v1357 = vunpack.c.l.b16 %v1314
        %v1358 = vpack.c.b16 %v1341, %v1340
        %v1359 = vpack.c.b16 %v1343, %v1342
        %v1360 = vpack.c.b16 %v1345, %v1344
        %v1361 = vpack.c.b16 %v1347, %v1346
        %v1362 = vpack.c.b16 %v1349, %v1348
        %v1363 = vpack.c.b16 %v1351, %v1350
        %v1364 = vpack.c.b16 %v1353, %v1352
        %v1365 = vpack.c.b16 %v1355, %v1354
        %v1366 = vpack.c.b16 %v1357, %v1356
        %v1377 = vsel %vm504, %v1282, 0
        %v1380 = vsel %vm504, %v1284, 0
        %v1383 = vsel %vm504, %v1286, 0
        %v1386 = vsel %vm504, %v1288, 0
        %v1389 = vsel %vm504, %v1290, 0
        %v1392 = vsel %vm504, %v1292, 0
        %v1395 = vsel %vm504, %v1294, 0
        %v1398 = vsel %vm504, %v1296, 0
        %1400 = vmatprep.subr.bf16.mxu0 0
        %1401 = vmatpush1.bf16.msra.mxu0 %v1365
        %1402 = vmatprep.subr.bf16.mxu0 0
        %1403 = vmatpush1.bf16.msra.mxu0 %v1364
        %1404 = vmatprep.subr.bf16.mxu0 0
        %1405 = vmatpush1.bf16.msra.mxu0 %v1363
        %1406 = vmatprep.subr.bf16.mxu0 0
        %1407 = vmatpush1.bf16.msra.mxu0 %v1362
        %1408 = vmatprep.subr.bf16.mxu0 0
        %1409 = vmatpush1.bf16.msra.mxu0 %v1361
        %1410 = vmatprep.subr.bf16.mxu0 0
        %1411 = vmatpush1.bf16.msra.mxu0 %v1360
        %1412 = vmatprep.subr.bf16.mxu0 0
        %1413 = vmatpush1.bf16.msra.mxu0 %v1359
        %1414 = vmatprep.subr.bf16.mxu0 0
        %1415 = vmatpush1.bf16.msra.mxu0 %v1358
        %1416 = vmatprep.subr.bf16.mxu0 0
        %1417 = vmatpush2.bf16.msra.mxu0 0
        %1418 = vmatprep.subr.bf16.mxu0 0
        %1419 = vmatpush2.bf16.msra.mxu0 0
        %1420 = vmatprep.subr.bf16.mxu0 0
        %1421 = vmatpush2.bf16.msra.mxu0 0
        %1422 = vmatprep.subr.bf16.mxu0 0
        %1423 = vmatpush2.bf16.msra.mxu0 0
        %1424 = vmatprep.subr.bf16.mxu0 0
        %1425 = vmatpush2.bf16.msra.mxu0 0
        %1426 = vmatprep.subr.bf16.mxu0 0
        %1427 = vmatpush2.bf16.msra.mxu0 0
        %1428 = vmatprep.subr.bf16.mxu0 0
        %1429 = vmatpush2.bf16.msra.mxu0 0
        %1430 = vmatprep.subr.bf16.mxu0 0
        %1431 = vmatpush2.bf16.msra.mxu0 %v1366
        %1432 = vmatprep.mubr.bf16.mxu0 %v1377
        %1433 = vmatmul.mubr.bf16.gmra.mxu0 %v1281
        %v1434 = vpop.f32.mrf.mxu0
        %v1435 = vadd.f32 %v1320, %v1434
        %v1436 = vpop.f32.mrf.mxu0
        %v1437 = vpop.f32.mrf.mxu0
        %v1438 = vadd.f32 %v1320, %v1437
        %v1439 = vpop.f32.mrf.mxu0
        %1440 = vmatprep.mubr.bf16.mxu0 %v1380
        %1441 = vmatmul.mubr.bf16.gmra.mxu0 %v1283
        %v1442 = vpop.f32.mrf.mxu0
        %v1443 = vadd.f32 %v1320, %v1442
        %v1444 = vpop.f32.mrf.mxu0
        %v1445 = vpop.f32.mrf.mxu0
        %v1446 = vadd.f32 %v1320, %v1445
        %v1447 = vpop.f32.mrf.mxu0
        %1448 = vmatprep.mubr.bf16.mxu0 %v1383
        %1449 = vmatmul.mubr.bf16.gmra.mxu0 %v1285
        %v1450 = vpop.f32.mrf.mxu0
        %v1451 = vadd.f32 %v1320, %v1450
        %v1452 = vpop.f32.mrf.mxu0
        %v1453 = vpop.f32.mrf.mxu0
        %v1454 = vadd.f32 %v1320, %v1453
        %v1455 = vpop.f32.mrf.mxu0
        %1456 = vmatprep.mubr.bf16.mxu0 %v1386
        %1457 = vmatmul.mubr.bf16.gmra.mxu0 %v1287
        %v1458 = vpop.f32.mrf.mxu0
        %v1459 = vadd.f32 %v1320, %v1458
        %v1460 = vpop.f32.mrf.mxu0
        %v1461 = vpop.f32.mrf.mxu0
        %v1462 = vadd.f32 %v1320, %v1461
        %v1463 = vpop.f32.mrf.mxu0
        %1464 = vmatprep.mubr.bf16.mxu0 %v1389
        %1465 = vmatmul.mubr.bf16.gmra.mxu0 %v1289
        %v1466 = vpop.f32.mrf.mxu0
        %v1467 = vadd.f32 %v1320, %v1466
        %v1468 = vpop.f32.mrf.mxu0
        %v1469 = vpop.f32.mrf.mxu0
        %v1470 = vadd.f32 %v1320, %v1469
        %v1471 = vpop.f32.mrf.mxu0
        %1472 = vmatprep.mubr.bf16.mxu0 %v1392
        %1473 = vmatmul.mubr.bf16.gmra.mxu0 %v1291
        %v1474 = vpop.f32.mrf.mxu0
        %v1475 = vadd.f32 %v1320, %v1474
        %v1476 = vpop.f32.mrf.mxu0
        %v1477 = vpop.f32.mrf.mxu0
        %v1478 = vadd.f32 %v1320, %v1477
        %v1479 = vpop.f32.mrf.mxu0
        %1480 = vmatprep.mubr.bf16.mxu0 %v1395
        %1481 = vmatmul.mubr.bf16.gmra.mxu0 %v1293
        %v1482 = vpop.f32.mrf.mxu0
        %v1483 = vadd.f32 %v1320, %v1482
        %v1484 = vpop.f32.mrf.mxu0
        %v1485 = vpop.f32.mrf.mxu0
        %v1486 = vadd.f32 %v1320, %v1485
        %v1487 = vpop.f32.mrf.mxu0
        %1488 = vmatprep.mubr.bf16.mxu0 %v1398
        %1489 = vmatmul.mubr.bf16.gmra.mxu0 %v1295
        %v1490 = vpop.f32.mrf.mxu0
        %v1491 = vadd.f32 %v1320, %v1490
        %v1492 = vpop.f32.mrf.mxu0
        %v1493 = vpop.f32.mrf.mxu0
        %v1494 = vadd.f32 %v1320, %v1493
        %v1495 = vpop.f32.mrf.mxu0
        %1496 = vdwg.mxu0
        %v1497 = vld [vmem:[#allocation3] sm:$0xff]
        %v1498 = vld [vmem:[#allocation3 + $0x8] sm:$0xff]
        %v1499 = vld [vmem:[#allocation3 + $0x10] sm:$0xff]
        %v1500 = vld [vmem:[#allocation3 + $0x18] sm:$0xff]
        %v1501 = vld [vmem:[#allocation3 + $0x20] sm:$0xff]
        %v1502 = vld [vmem:[#allocation3 + $0x28] sm:$0xff]
        %v1503 = vld [vmem:[#allocation3 + $0x30] sm:$0xff]
        %v1504 = vld [vmem:[#allocation3 + $0x38] sm:$0xff]
        %v1505 = vld [vmem:[#allocation3 + $0x40] sm:$0xff]
        %v1506 = vld [vmem:[#allocation3 + $0x48] sm:$0xff]
        %v1507 = vld [vmem:[#allocation3 + $0x50] sm:$0xff]
        %v1508 = vld [vmem:[#allocation3 + $0x58] sm:$0xff]
        %v1509 = vld [vmem:[#allocation3 + $0x60] sm:$0xff]
        %v1510 = vld [vmem:[#allocation3 + $0x68] sm:$0xff]
        %v1511 = vld [vmem:[#allocation3 + $0x70] sm:$0xff]
        %v1512 = vld [vmem:[#allocation3 + $0x78] sm:$0xff]
        %v1513 = vsub.f32 %v1435, %v1497
        %v1514 = vsub.f32 %v1438, %v1498
        %v1515 = vsub.f32 %v1443, %v1499
        %v1516 = vsub.f32 %v1446, %v1500
        %v1517 = vsub.f32 %v1451, %v1501
        %v1518 = vsub.f32 %v1454, %v1502
        %v1519 = vsub.f32 %v1459, %v1503
        %v1520 = vsub.f32 %v1462, %v1504
        %v1521 = vsub.f32 %v1467, %v1505
        %v1522 = vsub.f32 %v1470, %v1506
        %v1523 = vsub.f32 %v1475, %v1507
        %v1524 = vsub.f32 %v1478, %v1508
        %v1525 = vsub.f32 %v1483, %v1509
        %v1526 = vsub.f32 %v1486, %v1510
        %v1527 = vsub.f32 %v1491, %v1511
        %v1528 = vsub.f32 %v1494, %v1512
        %v1529 = vmul.f32 %v1513, 0.6666667
        %v1530 = vmul.f32 %v1514, 0.6666667
        %v1531 = vmul.f32 %v1515, 0.6666667
        %v1532 = vmul.f32 %v1516, 0.6666667
        %v1533 = vmul.f32 %v1517, 0.6666667
        %v1534 = vmul.f32 %v1518, 0.6666667
        %v1535 = vmul.f32 %v1519, 0.6666667
        %v1536 = vmul.f32 %v1520, 0.6666667
        %v1537 = vmul.f32 %v1521, 0.6666667
        %v1538 = vmul.f32 %v1522, 0.6666667
        %v1539 = vmul.f32 %v1523, 0.6666667
        %v1540 = vmul.f32 %v1524, 0.6666667
        %v1541 = vmul.f32 %v1525, 0.6666667
        %v1542 = vmul.f32 %v1526, 0.6666667
        %v1543 = vmul.f32 %v1527, 0.6666667
        %v1544 = vmul.f32 %v1528, 0.6666667
        %v1545 = vadd.f32 %v1497, %v1529
        %v1546 = vadd.f32 %v1498, %v1530
        %v1547 = vadd.f32 %v1499, %v1531
        %v1548 = vadd.f32 %v1500, %v1532
        %v1549 = vadd.f32 %v1501, %v1533
        %v1550 = vadd.f32 %v1502, %v1534
        %v1551 = vadd.f32 %v1503, %v1535
        %v1552 = vadd.f32 %v1504, %v1536
        %v1553 = vadd.f32 %v1505, %v1537
        %v1554 = vadd.f32 %v1506, %v1538
        %v1555 = vadd.f32 %v1507, %v1539
        %v1556 = vadd.f32 %v1508, %v1540
        %v1557 = vadd.f32 %v1509, %v1541
        %v1558 = vadd.f32 %v1510, %v1542
        %v1559 = vadd.f32 %v1511, %v1543
        %v1560 = vadd.f32 %v1512, %v1544
        %vm1561 = vcmp.ge.f32.partialorder %v1545, 1.0
        %vm1562 = vcmp.ge.f32.partialorder %v1546, 1.0
        %vm1563 = vcmp.ge.f32.partialorder %v1547, 1.0
        %vm1564 = vcmp.ge.f32.partialorder %v1548, 1.0
        %vm1565 = vcmp.ge.f32.partialorder %v1549, 1.0
        %vm1566 = vcmp.ge.f32.partialorder %v1550, 1.0
        %vm1567 = vcmp.ge.f32.partialorder %v1551, 1.0
        %vm1568 = vcmp.ge.f32.partialorder %v1552, 1.0
        %vm1569 = vcmp.ge.f32.partialorder %v1553, 1.0
        %vm1570 = vcmp.ge.f32.partialorder %v1554, 1.0
        %vm1571 = vcmp.ge.f32.partialorder %v1555, 1.0
        %vm1572 = vcmp.ge.f32.partialorder %v1556, 1.0
        %vm1573 = vcmp.ge.f32.partialorder %v1557, 1.0
        %vm1574 = vcmp.ge.f32.partialorder %v1558, 1.0
        %vm1575 = vcmp.ge.f32.partialorder %v1559, 1.0
        %vm1576 = vcmp.ge.f32.partialorder %v1560, 1.0
        %v1577 = vsel %vm1561, 0.0, %v1545
        %v1578 = vsel %vm1562, 0.0, %v1546
        %v1579 = vsel %vm1563, 0.0, %v1547
        %v1580 = vsel %vm1564, 0.0, %v1548
        %v1581 = vsel %vm1565, 0.0, %v1549
        %v1582 = vsel %vm1566, 0.0, %v1550
        %v1583 = vsel %vm1567, 0.0, %v1551
        %v1584 = vsel %vm1568, 0.0, %v1552
        %v1585 = vsel %vm1569, 0.0, %v1553
        %v1586 = vsel %vm1570, 0.0, %v1554
        %v1587 = vsel %vm1571, 0.0, %v1555
        %v1588 = vsel %vm1572, 0.0, %v1556
        %v1589 = vsel %vm1573, 0.0, %v1557
        %v1590 = vsel %vm1574, 0.0, %v1558
        %v1591 = vsel %vm1575, 0.0, %v1559
        %v1592 = vsel %vm1576, 0.0, %v1560
        %1593 = vst.msk [vmem:[#allocation3] sm:$0xff] %vm504, %v1577
        %1594 = vst.msk [vmem:[#allocation3 + $0x8] sm:$0xff] %vm504, %v1578
        %1595 = vst.msk [vmem:[#allocation3 + $0x10] sm:$0xff] %vm504, %v1579
        %1596 = vst.msk [vmem:[#allocation3 + $0x18] sm:$0xff] %vm504, %v1580
        %1597 = vst.msk [vmem:[#allocation3 + $0x20] sm:$0xff] %vm504, %v1581
        %1598 = vst.msk [vmem:[#allocation3 + $0x28] sm:$0xff] %vm504, %v1582
        %1599 = vst.msk [vmem:[#allocation3 + $0x30] sm:$0xff] %vm504, %v1583
        %1600 = vst.msk [vmem:[#allocation3 + $0x38] sm:$0xff] %vm504, %v1584
        %1601 = vst.msk [vmem:[#allocation3 + $0x40] sm:$0xff] %vm504, %v1585
        %1602 = vst.msk [vmem:[#allocation3 + $0x48] sm:$0xff] %vm504, %v1586
        %1603 = vst.msk [vmem:[#allocation3 + $0x50] sm:$0xff] %vm504, %v1587
        %1604 = vst.msk [vmem:[#allocation3 + $0x58] sm:$0xff] %vm504, %v1588
        %1605 = vst.msk [vmem:[#allocation3 + $0x60] sm:$0xff] %vm504, %v1589
        %1606 = vst.msk [vmem:[#allocation3 + $0x68] sm:$0xff] %vm504, %v1590
        %1607 = vst.msk [vmem:[#allocation3 + $0x70] sm:$0xff] %vm504, %v1591
        %1608 = vst.msk [vmem:[#allocation3 + $0x78] sm:$0xff] %vm504, %v1592
        %v1609 = vsel %vm1561, 1, 0
        %v1610 = vsel %vm1562, 1, 0
        %v1611 = vsel %vm1563, 1, 0
        %v1612 = vsel %vm1564, 1, 0
        %v1613 = vsel %vm1565, 1, 0
        %v1614 = vsel %vm1566, 1, 0
        %v1615 = vsel %vm1567, 1, 0
        %v1616 = vsel %vm1568, 1, 0
        %v1617 = vsel %vm1569, 1, 0
        %v1618 = vsel %vm1570, 1, 0
        %v1619 = vsel %vm1571, 1, 0
        %v1620 = vsel %vm1572, 1, 0
        %v1621 = vsel %vm1573, 1, 0
        %v1622 = vsel %vm1574, 1, 0
        %v1623 = vsel %vm1575, 1, 0
        %v1624 = vsel %vm1576, 1, 0
        %v1625 = vcvt.s32.f32 %v1609
        %v1626 = vcvt.s32.f32 %v1610
        %v1627 = vcvt.s32.f32 %v1611
        %v1628 = vcvt.s32.f32 %v1612
        %v1629 = vcvt.s32.f32 %v1613
        %v1630 = vcvt.s32.f32 %v1614
        %v1631 = vcvt.s32.f32 %v1615
        %v1632 = vcvt.s32.f32 %v1616
        %v1633 = vcvt.s32.f32 %v1617
        %v1634 = vcvt.s32.f32 %v1618
        %v1635 = vcvt.s32.f32 %v1619
        %v1636 = vcvt.s32.f32 %v1620
        %v1637 = vcvt.s32.f32 %v1621
        %v1638 = vcvt.s32.f32 %v1622
        %v1639 = vcvt.s32.f32 %v1623
        %v1640 = vcvt.s32.f32 %v1624
        %1641 = vst.msk [vmem:[%s553 + $0x8] sm:$0xff] %vm504, %v1625
        %1642 = vst.msk [vmem:[%s553 + $0x20] sm:$0xff] %vm504, %v1626
        %1643 = vst.msk [vmem:[%s553 + $0x38] sm:$0xff] %vm504, %v1627
        %1644 = vst.msk [vmem:[%s553 + $0x50] sm:$0xff] %vm504, %v1628
        %1645 = vst.msk [vmem:[%s553 + $0x68] sm:$0xff] %vm504, %v1629
        %1646 = vst.msk [vmem:[%s553 + $0x80] sm:$0xff] %vm504, %v1630
        %1647 = vst.msk [vmem:[%s553 + $0x98] sm:$0xff] %vm504, %v1631
        %1648 = vst.msk [vmem:[%s553 + $0xb0] sm:$0xff] %vm504, %v1632
        %1649 = vst.msk [vmem:[%s553 + $0xf8] sm:$0xff] %vm504, %v1633
        %1650 = vst.msk [vmem:[%s553 + $0x110] sm:$0xff] %vm504, %v1634
        %1651 = vst.msk [vmem:[%s553 + $0x128] sm:$0xff] %vm504, %v1635
        %1652 = vst.msk [vmem:[%s553 + $0x140] sm:$0xff] %vm504, %v1636
        %1653 = vst.msk [vmem:[%s553 + $0x158] sm:$0xff] %vm504, %v1637
        %1654 = vst.msk [vmem:[%s553 + $0x170] sm:$0xff] %vm504, %v1638
        %1655 = vst.msk [vmem:[%s553 + $0x188] sm:$0xff] %vm504, %v1639
        %1656 = vst.msk [vmem:[%s553 + $0x1a0] sm:$0xff] %vm504, %v1640
        %v1657 = vld [vmem:[#allocation4 + $0x7] sm:$0xff]
        %v1658 = vld [vmem:[#allocation4 + $0x1f] sm:$0xff]
        %v1659 = vld [vmem:[#allocation4 + $0x37] sm:$0xff]
        %v1660 = vld [vmem:[#allocation4 + $0x4f] sm:$0xff]
        %v1661 = vld [vmem:[#allocation4 + $0x67] sm:$0xff]
        %v1662 = vld [vmem:[#allocation4 + $0x7f] sm:$0xff]
        %v1663 = vld [vmem:[#allocation4 + $0x97] sm:$0xff]
        %v1664 = vld [vmem:[#allocation4 + $0xaf] sm:$0xff]
        %v1665 = vld [vmem:[#allocation4 + $0xf7] sm:$0xff]
        %v1666 = vld [vmem:[#allocation4 + $0x10f] sm:$0xff]
        %v1667 = vld [vmem:[#allocation4 + $0x127] sm:$0xff]
        %v1668 = vld [vmem:[#allocation4 + $0x13f] sm:$0xff]
        %v1669 = vld [vmem:[#allocation4 + $0x157] sm:$0xff]
        %v1670 = vld [vmem:[#allocation4 + $0x16f] sm:$0xff]
        %v1671 = vld [vmem:[#allocation4 + $0x187] sm:$0xff]
        %v1672 = vld [vmem:[#allocation4 + $0x19f] sm:$0xff]
        %v1673 = vld [vmem:[#allocation4 + $0x8] sm:$0xff]
        %v1674 = vld [vmem:[#allocation4 + $0x20] sm:$0xff]
        %v1675 = vld [vmem:[#allocation4 + $0x38] sm:$0xff]
        %v1676 = vld [vmem:[#allocation4 + $0x50] sm:$0xff]
        %v1677 = vld [vmem:[#allocation4 + $0x68] sm:$0xff]
        %v1678 = vld [vmem:[#allocation4 + $0x80] sm:$0xff]
        %v1679 = vld [vmem:[#allocation4 + $0x98] sm:$0xff]
        %v1680 = vld [vmem:[#allocation4 + $0xb0] sm:$0xff]
        %v1681 = vld [vmem:[#allocation4 + $0xf8] sm:$0xff]
        %v1682 = vld [vmem:[#allocation4 + $0x110] sm:$0xff]
        %v1683 = vld [vmem:[#allocation4 + $0x128] sm:$0xff]
        %v1684 = vld [vmem:[#allocation4 + $0x140] sm:$0xff]
        %v1685 = vld [vmem:[#allocation4 + $0x158] sm:$0xff]
        %v1686 = vld [vmem:[#allocation4 + $0x170] sm:$0xff]
        %v1687 = vld [vmem:[#allocation4 + $0x188] sm:$0xff]
        %v1688 = vld [vmem:[#allocation4 + $0x1a0] sm:$0xff]
        %v1689 = vld [vmem:[#allocation4 + $0x9] sm:$0xff]
        %v1690 = vld [vmem:[#allocation4 + $0x21] sm:$0xff]
        %v1691 = vld [vmem:[#allocation4 + $0x39] sm:$0xff]
        %v1692 = vld [vmem:[#allocation4 + $0x51] sm:$0xff]
        %v1693 = vld [vmem:[#allocation4 + $0x69] sm:$0xff]
        %v1694 = vld [vmem:[#allocation4 + $0x81] sm:$0xff]
        %v1695 = vld [vmem:[#allocation4 + $0x99] sm:$0xff]
        %v1696 = vld [vmem:[#allocation4 + $0xb1] sm:$0xff]
        %v1697 = vld [vmem:[#allocation4 + $0xf9] sm:$0xff]
        %v1698 = vld [vmem:[#allocation4 + $0x111] sm:$0xff]
        %v1699 = vld [vmem:[#allocation4 + $0x129] sm:$0xff]
        %v1700 = vld [vmem:[#allocation4 + $0x141] sm:$0xff]
        %v1701 = vld [vmem:[#allocation4 + $0x159] sm:$0xff]
        %v1702 = vld [vmem:[#allocation4 + $0x171] sm:$0xff]
        %v1703 = vld [vmem:[#allocation4 + $0x189] sm:$0xff]
        %v1704 = vld [vmem:[#allocation4 + $0x1a1] sm:$0xff]
        %v1705 = vld [vmem:[%s553 + $0x7] sm:$0xff]
        %v1706 = vld [vmem:[%s553 + $0x1f] sm:$0xff]
        %v1707 = vld [vmem:[%s553 + $0x37] sm:$0xff]
        %v1708 = vld [vmem:[%s553 + $0x4f] sm:$0xff]
        %v1709 = vld [vmem:[%s553 + $0x67] sm:$0xff]
        %v1710 = vld [vmem:[%s553 + $0x7f] sm:$0xff]
        %v1711 = vld [vmem:[%s553 + $0x97] sm:$0xff]
        %v1712 = vld [vmem:[%s553 + $0xaf] sm:$0xff]
        %v1713 = vld [vmem:[%s553 + $0xf7] sm:$0xff]
        %v1714 = vld [vmem:[%s553 + $0x10f] sm:$0xff]
        %v1715 = vld [vmem:[%s553 + $0x127] sm:$0xff]
        %v1716 = vld [vmem:[%s553 + $0x13f] sm:$0xff]
        %v1717 = vld [vmem:[%s553 + $0x157] sm:$0xff]
        %v1718 = vld [vmem:[%s553 + $0x16f] sm:$0xff]
        %v1719 = vld [vmem:[%s553 + $0x187] sm:$0xff]
        %v1720 = vld [vmem:[%s553 + $0x19f] sm:$0xff]
        %v1721 = vld [vmem:[%s553 + $0x8] sm:$0xff]
        %v1722 = vld [vmem:[%s553 + $0x20] sm:$0xff]
        %v1723 = vld [vmem:[%s553 + $0x38] sm:$0xff]
        %v1724 = vld [vmem:[%s553 + $0x50] sm:$0xff]
        %v1725 = vld [vmem:[%s553 + $0x68] sm:$0xff]
        %v1726 = vld [vmem:[%s553 + $0x80] sm:$0xff]
        %v1727 = vld [vmem:[%s553 + $0x98] sm:$0xff]
        %v1728 = vld [vmem:[%s553 + $0xb0] sm:$0xff]
        %v1729 = vld [vmem:[%s553 + $0xf8] sm:$0xff]
        %v1730 = vld [vmem:[%s553 + $0x110] sm:$0xff]
        %v1731 = vld [vmem:[%s553 + $0x128] sm:$0xff]
        %v1732 = vld [vmem:[%s553 + $0x140] sm:$0xff]
        %v1733 = vld [vmem:[%s553 + $0x158] sm:$0xff]
        %v1734 = vld [vmem:[%s553 + $0x170] sm:$0xff]
        %v1735 = vld [vmem:[%s553 + $0x188] sm:$0xff]
        %v1736 = vld [vmem:[%s553 + $0x1a0] sm:$0xff]
        %v1737 = vld [vmem:[%s553 + $0x9] sm:$0xff]
        %v1738 = vld [vmem:[%s553 + $0x21] sm:$0xff]
        %v1739 = vld [vmem:[%s553 + $0x39] sm:$0xff]
        %v1740 = vld [vmem:[%s553 + $0x51] sm:$0xff]
        %v1741 = vld [vmem:[%s553 + $0x69] sm:$0xff]
        %v1742 = vld [vmem:[%s553 + $0x81] sm:$0xff]
        %v1743 = vld [vmem:[%s553 + $0x99] sm:$0xff]
        %v1744 = vld [vmem:[%s553 + $0xb1] sm:$0xff]
        %v1745 = vld [vmem:[%s553 + $0xf9] sm:$0xff]
        %v1746 = vld [vmem:[%s553 + $0x111] sm:$0xff]
        %v1747 = vld [vmem:[%s553 + $0x129] sm:$0xff]
        %v1748 = vld [vmem:[%s553 + $0x141] sm:$0xff]
        %v1749 = vld [vmem:[%s553 + $0x159] sm:$0xff]
        %v1750 = vld [vmem:[%s553 + $0x171] sm:$0xff]
        %v1751 = vld [vmem:[%s553 + $0x189] sm:$0xff]
        %v1752 = vld [vmem:[%s553 + $0x1a1] sm:$0xff]
        %v1753 = vld [vmem:[%s666 + $0x7] sm:$0xff]
        %v1754 = vld [vmem:[%s666 + $0x1f] sm:$0xff]
        %v1755 = vld [vmem:[%s666 + $0x37] sm:$0xff]
        %v1756 = vld [vmem:[%s666 + $0x4f] sm:$0xff]
        %v1757 = vld [vmem:[%s666 + $0x67] sm:$0xff]
        %v1758 = vld [vmem:[%s666 + $0x7f] sm:$0xff]
        %v1759 = vld [vmem:[%s666 + $0x97] sm:$0xff]
        %v1760 = vld [vmem:[%s666 + $0xaf] sm:$0xff]
        %v1761 = vld [vmem:[%s666 + $0xf7] sm:$0xff]
        %v1762 = vld [vmem:[%s666 + $0x10f] sm:$0xff]
        %v1763 = vld [vmem:[%s666 + $0x127] sm:$0xff]
        %v1764 = vld [vmem:[%s666 + $0x13f] sm:$0xff]
        %v1765 = vld [vmem:[%s666 + $0x157] sm:$0xff]
        %v1766 = vld [vmem:[%s666 + $0x16f] sm:$0xff]
        %v1767 = vld [vmem:[%s666 + $0x187] sm:$0xff]
        %v1768 = vld [vmem:[%s666 + $0x19f] sm:$0xff]
        %v1769 = vld [vmem:[%s666 + $0x8] sm:$0xff]
        %v1770 = vld [vmem:[%s666 + $0x20] sm:$0xff]
        %v1771 = vld [vmem:[%s666 + $0x38] sm:$0xff]
        %v1772 = vld [vmem:[%s666 + $0x50] sm:$0xff]
        %v1773 = vld [vmem:[%s666 + $0x68] sm:$0xff]
        %v1774 = vld [vmem:[%s666 + $0x80] sm:$0xff]
        %v1775 = vld [vmem:[%s666 + $0x98] sm:$0xff]
        %v1776 = vld [vmem:[%s666 + $0xb0] sm:$0xff]
        %v1777 = vld [vmem:[%s666 + $0xf8] sm:$0xff]
        %v1778 = vld [vmem:[%s666 + $0x110] sm:$0xff]
        %v1779 = vld [vmem:[%s666 + $0x128] sm:$0xff]
        %v1780 = vld [vmem:[%s666 + $0x140] sm:$0xff]
        %v1781 = vld [vmem:[%s666 + $0x158] sm:$0xff]
        %v1782 = vld [vmem:[%s666 + $0x170] sm:$0xff]
        %v1783 = vld [vmem:[%s666 + $0x188] sm:$0xff]
        %v1784 = vld [vmem:[%s666 + $0x1a0] sm:$0xff]
        %v1785 = vld [vmem:[%s666 + $0x9] sm:$0xff]
        %v1786 = vld [vmem:[%s666 + $0x21] sm:$0xff]
        %v1787 = vld [vmem:[%s666 + $0x39] sm:$0xff]
        %v1788 = vld [vmem:[%s666 + $0x51] sm:$0xff]
        %v1789 = vld [vmem:[%s666 + $0x69] sm:$0xff]
        %v1790 = vld [vmem:[%s666 + $0x81] sm:$0xff]
        %v1791 = vld [vmem:[%s666 + $0x99] sm:$0xff]
        %v1792 = vld [vmem:[%s666 + $0xb1] sm:$0xff]
        %v1793 = vld [vmem:[%s666 + $0xf9] sm:$0xff]
        %v1794 = vld [vmem:[%s666 + $0x111] sm:$0xff]
        %v1795 = vld [vmem:[%s666 + $0x129] sm:$0xff]
        %v1796 = vld [vmem:[%s666 + $0x141] sm:$0xff]
        %v1797 = vld [vmem:[%s666 + $0x159] sm:$0xff]
        %v1798 = vld [vmem:[%s666 + $0x171] sm:$0xff]
        %v1799 = vld [vmem:[%s666 + $0x189] sm:$0xff]
        %v1800 = vld [vmem:[%s666 + $0x1a1] sm:$0xff]
        %1817 = vrot.lane.b32.xlu0 %v1673, 16
        %v1818 = vpop.permute.xlu0 %1817
        %1819 = vrot.lane.b32.xlu0 %v1674, 16
        %v1820 = vpop.permute.xlu0 %1819
        %1821 = vrot.lane.b32.xlu0 %v1675, 16
        %v1822 = vpop.permute.xlu0 %1821
        %1823 = vrot.lane.b32.xlu0 %v1676, 16
        %v1824 = vpop.permute.xlu0 %1823
        %1825 = vrot.lane.b32.xlu0 %v1677, 16
        %v1826 = vpop.permute.xlu0 %1825
        %1827 = vrot.lane.b32.xlu0 %v1678, 16
        %v1828 = vpop.permute.xlu0 %1827
        %1829 = vrot.lane.b32.xlu0 %v1679, 16
        %v1830 = vpop.permute.xlu0 %1829
        %1831 = vrot.lane.b32.xlu0 %v1680, 16
        %v1832 = vpop.permute.xlu0 %1831
        %1833 = vrot.lane.b32.xlu0 %v1681, 16
        %v1834 = vpop.permute.xlu0 %1833
        %1835 = vrot.lane.b32.xlu0 %v1682, 16
        %v1836 = vpop.permute.xlu0 %1835
        %1837 = vrot.lane.b32.xlu0 %v1683, 16
        %v1838 = vpop.permute.xlu0 %1837
        %1839 = vrot.lane.b32.xlu0 %v1684, 16
        %v1840 = vpop.permute.xlu0 %1839
        %1841 = vrot.lane.b32.xlu0 %v1685, 16
        %v1842 = vpop.permute.xlu0 %1841
        %1843 = vrot.lane.b32.xlu0 %v1686, 16
        %v1844 = vpop.permute.xlu0 %1843
        %1845 = vrot.lane.b32.xlu0 %v1687, 16
        %v1846 = vpop.permute.xlu0 %1845
        %1847 = vrot.lane.b32.xlu0 %v1688, 16
        %v1848 = vpop.permute.xlu0 %1847
        %1881 = vrot.lane.b32.xlu0 %v1689, 32
        %v1882 = vpop.permute.xlu0 %1881
        %1883 = vrot.lane.b32.xlu0 %v1690, 32
        %v1884 = vpop.permute.xlu0 %1883
        %1885 = vrot.lane.b32.xlu0 %v1691, 32
        %v1886 = vpop.permute.xlu0 %1885
        %1887 = vrot.lane.b32.xlu0 %v1692, 32
        %v1888 = vpop.permute.xlu0 %1887
        %1889 = vrot.lane.b32.xlu0 %v1693, 32
        %v1890 = vpop.permute.xlu0 %1889
        %1891 = vrot.lane.b32.xlu0 %v1694, 32
        %v1892 = vpop.permute.xlu0 %1891
        %1893 = vrot.lane.b32.xlu0 %v1695, 32
        %v1894 = vpop.permute.xlu0 %1893
        %1895 = vrot.lane.b32.xlu0 %v1696, 32
        %v1896 = vpop.permute.xlu0 %1895
        %1897 = vrot.lane.b32.xlu0 %v1697, 32
        %v1898 = vpop.permute.xlu0 %1897
        %1899 = vrot.lane.b32.xlu0 %v1698, 32
        %v1900 = vpop.permute.xlu0 %1899
        %1901 = vrot.lane.b32.xlu0 %v1699, 32
        %v1902 = vpop.permute.xlu0 %1901
        %1903 = vrot.lane.b32.xlu0 %v1700, 32
        %v1904 = vpop.permute.xlu0 %1903
        %1905 = vrot.lane.b32.xlu0 %v1701, 32
        %v1906 = vpop.permute.xlu0 %1905
        %1907 = vrot.lane.b32.xlu0 %v1702, 32
        %v1908 = vpop.permute.xlu0 %1907
        %1909 = vrot.lane.b32.xlu0 %v1703, 32
        %v1910 = vpop.permute.xlu0 %1909
        %1911 = vrot.lane.b32.xlu0 %v1704, 32
        %v1912 = vpop.permute.xlu0 %1911
        %1945 = vrot.lane.b32.xlu0 %v1705, 48
        %v1946 = vpop.permute.xlu0 %1945
        %1947 = vrot.lane.b32.xlu0 %v1706, 48
        %v1948 = vpop.permute.xlu0 %1947
        %1949 = vrot.lane.b32.xlu0 %v1707, 48
        %v1950 = vpop.permute.xlu0 %1949
        %1951 = vrot.lane.b32.xlu0 %v1708, 48
        %v1952 = vpop.permute.xlu0 %1951
        %1953 = vrot.lane.b32.xlu0 %v1709, 48
        %v1954 = vpop.permute.xlu0 %1953
        %1955 = vrot.lane.b32.xlu0 %v1710, 48
        %v1956 = vpop.permute.xlu0 %1955
        %1957 = vrot.lane.b32.xlu0 %v1711, 48
        %v1958 = vpop.permute.xlu0 %1957
        %1959 = vrot.lane.b32.xlu0 %v1712, 48
        %v1960 = vpop.permute.xlu0 %1959
        %1961 = vrot.lane.b32.xlu0 %v1713, 48
        %v1962 = vpop.permute.xlu0 %1961
        %1963 = vrot.lane.b32.xlu0 %v1714, 48
        %v1964 = vpop.permute.xlu0 %1963
        %1965 = vrot.lane.b32.xlu0 %v1715, 48
        %v1966 = vpop.permute.xlu0 %1965
        %1967 = vrot.lane.b32.xlu0 %v1716, 48
        %v1968 = vpop.permute.xlu0 %1967
        %1969 = vrot.lane.b32.xlu0 %v1717, 48
        %v1970 = vpop.permute.xlu0 %1969
        %1971 = vrot.lane.b32.xlu0 %v1718, 48
        %v1972 = vpop.permute.xlu0 %1971
        %1973 = vrot.lane.b32.xlu0 %v1719, 48
        %v1974 = vpop.permute.xlu0 %1973
        %1975 = vrot.lane.b32.xlu0 %v1720, 48
        %v1976 = vpop.permute.xlu0 %1975
        %2009 = vrot.lane.b32.xlu0 %v1721, 64
        %v2010 = vpop.permute.xlu0 %2009
        %2011 = vrot.lane.b32.xlu0 %v1722, 64
        %v2012 = vpop.permute.xlu0 %2011
        %2013 = vrot.lane.b32.xlu0 %v1723, 64
        %v2014 = vpop.permute.xlu0 %2013
        %2015 = vrot.lane.b32.xlu0 %v1724, 64
        %v2016 = vpop.permute.xlu0 %2015
        %2017 = vrot.lane.b32.xlu0 %v1725, 64
        %v2018 = vpop.permute.xlu0 %2017
        %2019 = vrot.lane.b32.xlu0 %v1726, 64
        %v2020 = vpop.permute.xlu0 %2019
        %2021 = vrot.lane.b32.xlu0 %v1727, 64
        %v2022 = vpop.permute.xlu0 %2021
        %2023 = vrot.lane.b32.xlu0 %v1728, 64
        %v2024 = vpop.permute.xlu0 %2023
        %2025 = vrot.lane.b32.xlu0 %v1729, 64
        %v2026 = vpop.permute.xlu0 %2025
        %2027 = vrot.lane.b32.xlu0 %v1730, 64
        %v2028 = vpop.permute.xlu0 %2027
        %2029 = vrot.lane.b32.xlu0 %v1731, 64
        %v2030 = vpop.permute.xlu0 %2029
        %2031 = vrot.lane.b32.xlu0 %v1732, 64
        %v2032 = vpop.permute.xlu0 %2031
        %2033 = vrot.lane.b32.xlu0 %v1733, 64
        %v2034 = vpop.permute.xlu0 %2033
        %2035 = vrot.lane.b32.xlu0 %v1734, 64
        %v2036 = vpop.permute.xlu0 %2035
        %2037 = vrot.lane.b32.xlu0 %v1735, 64
        %v2038 = vpop.permute.xlu0 %2037
        %2039 = vrot.lane.b32.xlu0 %v1736, 64
        %v2040 = vpop.permute.xlu0 %2039
        %2073 = vrot.lane.b32.xlu0 %v1737, 80
        %v2074 = vpop.permute.xlu0 %2073
        %2075 = vrot.lane.b32.xlu0 %v1738, 80
        %v2076 = vpop.permute.xlu0 %2075
        %2077 = vrot.lane.b32.xlu0 %v1739, 80
        %v2078 = vpop.permute.xlu0 %2077
        %2079 = vrot.lane.b32.xlu0 %v1740, 80
        %v2080 = vpop.permute.xlu0 %2079
        %2081 = vrot.lane.b32.xlu0 %v1741, 80
        %v2082 = vpop.permute.xlu0 %2081
        %2083 = vrot.lane.b32.xlu0 %v1742, 80
        %v2084 = vpop.permute.xlu0 %2083
        %2085 = vrot.lane.b32.xlu0 %v1743, 80
        %v2086 = vpop.permute.xlu0 %2085
        %2087 = vrot.lane.b32.xlu0 %v1744, 80
        %v2088 = vpop.permute.xlu0 %2087
        %2089 = vrot.lane.b32.xlu0 %v1745, 80
        %v2090 = vpop.permute.xlu0 %2089
        %2091 = vrot.lane.b32.xlu0 %v1746, 80
        %v2092 = vpop.permute.xlu0 %2091
        %2093 = vrot.lane.b32.xlu0 %v1747, 80
        %v2094 = vpop.permute.xlu0 %2093
        %2095 = vrot.lane.b32.xlu0 %v1748, 80
        %v2096 = vpop.permute.xlu0 %2095
        %2097 = vrot.lane.b32.xlu0 %v1749, 80
        %v2098 = vpop.permute.xlu0 %2097
        %2099 = vrot.lane.b32.xlu0 %v1750, 80
        %v2100 = vpop.permute.xlu0 %2099
        %2101 = vrot.lane.b32.xlu0 %v1751, 80
        %v2102 = vpop.permute.xlu0 %2101
        %2103 = vrot.lane.b32.xlu0 %v1752, 80
        %v2104 = vpop.permute.xlu0 %2103
        %2137 = vrot.lane.b32.xlu0 %v1753, 96
        %v2138 = vpop.permute.xlu0 %2137
        %2139 = vrot.lane.b32.xlu0 %v1754, 96
        %v2140 = vpop.permute.xlu0 %2139
        %2141 = vrot.lane.b32.xlu0 %v1755, 96
        %v2142 = vpop.permute.xlu0 %2141
        %2143 = vrot.lane.b32.xlu0 %v1756, 96
        %v2144 = vpop.permute.xlu0 %2143
        %2145 = vrot.lane.b32.xlu0 %v1757, 96
        %v2146 = vpop.permute.xlu0 %2145
        %2147 = vrot.lane.b32.xlu0 %v1758, 96
        %v2148 = vpop.permute.xlu0 %2147
        %2149 = vrot.lane.b32.xlu0 %v1759, 96
        %v2150 = vpop.permute.xlu0 %2149
        %2151 = vrot.lane.b32.xlu0 %v1760, 96
        %v2152 = vpop.permute.xlu0 %2151
        %2153 = vrot.lane.b32.xlu0 %v1761, 96
        %v2154 = vpop.permute.xlu0 %2153
        %2155 = vrot.lane.b32.xlu0 %v1762, 96
        %v2156 = vpop.permute.xlu0 %2155
        %2157 = vrot.lane.b32.xlu0 %v1763, 96
        %v2158 = vpop.permute.xlu0 %2157
        %2159 = vrot.lane.b32.xlu0 %v1764, 96
        %v2160 = vpop.permute.xlu0 %2159
        %2161 = vrot.lane.b32.xlu0 %v1765, 96
        %v2162 = vpop.permute.xlu0 %2161
        %2163 = vrot.lane.b32.xlu0 %v1766, 96
        %v2164 = vpop.permute.xlu0 %2163
        %2165 = vrot.lane.b32.xlu0 %v1767, 96
        %v2166 = vpop.permute.xlu0 %2165
        %2167 = vrot.lane.b32.xlu0 %v1768, 96
        %v2168 = vpop.permute.xlu0 %2167
        %2201 = vrot.lane.b32.xlu0 %v1769, 112
        %v2202 = vpop.permute.xlu0 %2201
        %2203 = vrot.lane.b32.xlu0 %v1770, 112
        %v2204 = vpop.permute.xlu0 %2203
        %2205 = vrot.lane.b32.xlu0 %v1771, 112
        %v2206 = vpop.permute.xlu0 %2205
        %2207 = vrot.lane.b32.xlu0 %v1772, 112
        %v2208 = vpop.permute.xlu0 %2207
        %2209 = vrot.lane.b32.xlu0 %v1773, 112
        %v2210 = vpop.permute.xlu0 %2209
        %2211 = vrot.lane.b32.xlu0 %v1774, 112
        %v2212 = vpop.permute.xlu0 %2211
        %2213 = vrot.lane.b32.xlu0 %v1775, 112
        %v2214 = vpop.permute.xlu0 %2213
        %2215 = vrot.lane.b32.xlu0 %v1776, 112
        %v2216 = vpop.permute.xlu0 %2215
        %2217 = vrot.lane.b32.xlu0 %v1777, 112
        %v2218 = vpop.permute.xlu0 %2217
        %2219 = vrot.lane.b32.xlu0 %v1778, 112
        %v2220 = vpop.permute.xlu0 %2219
        %2221 = vrot.lane.b32.xlu0 %v1779, 112
        %v2222 = vpop.permute.xlu0 %2221
        %2223 = vrot.lane.b32.xlu0 %v1780, 112
        %v2224 = vpop.permute.xlu0 %2223
        %2225 = vrot.lane.b32.xlu0 %v1781, 112
        %v2226 = vpop.permute.xlu0 %2225
        %2227 = vrot.lane.b32.xlu0 %v1782, 112
        %v2228 = vpop.permute.xlu0 %2227
        %2229 = vrot.lane.b32.xlu0 %v1783, 112
        %v2230 = vpop.permute.xlu0 %2229
        %2231 = vrot.lane.b32.xlu0 %v1784, 112
        %v2232 = vpop.permute.xlu0 %2231
        %v2249 = vsel %vm504, %v1657, %v1818
        %v2250 = vsel %vm504, %v1658, %v1820
        %v2251 = vsel %vm504, %v1659, %v1822
        %v2252 = vsel %vm504, %v1660, %v1824
        %v2253 = vsel %vm504, %v1661, %v1826
        %v2254 = vsel %vm504, %v1662, %v1828
        %v2255 = vsel %vm504, %v1663, %v1830
        %v2256 = vsel %vm504, %v1664, %v1832
        %v2257 = vsel %vm504, %v1665, %v1834
        %v2258 = vsel %vm504, %v1666, %v1836
        %v2259 = vsel %vm504, %v1667, %v1838
        %v2260 = vsel %vm504, %v1668, %v1840
        %v2261 = vsel %vm504, %v1669, %v1842
        %v2262 = vsel %vm504, %v1670, %v1844
        %v2263 = vsel %vm504, %v1671, %v1846
        %v2264 = vsel %vm504, %v1672, %v1848
        %v2265 = vsel %vm1179, %v2249, %v1882
        %v2266 = vsel %vm1179, %v2250, %v1884
        %v2267 = vsel %vm1179, %v2251, %v1886
        %v2268 = vsel %vm1179, %v2252, %v1888
        %v2269 = vsel %vm1179, %v2253, %v1890
        %v2270 = vsel %vm1179, %v2254, %v1892
        %v2271 = vsel %vm1179, %v2255, %v1894
        %v2272 = vsel %vm1179, %v2256, %v1896
        %v2273 = vsel %vm1179, %v2257, %v1898
        %v2274 = vsel %vm1179, %v2258, %v1900
        %v2275 = vsel %vm1179, %v2259, %v1902
        %v2276 = vsel %vm1179, %v2260, %v1904
        %v2277 = vsel %vm1179, %v2261, %v1906
        %v2278 = vsel %vm1179, %v2262, %v1908
        %v2279 = vsel %vm1179, %v2263, %v1910
        %v2280 = vsel %vm1179, %v2264, %v1912
        %v2281 = vsel %vm1196, %v2265, %v1946
        %v2282 = vsel %vm1196, %v2266, %v1948
        %v2283 = vsel %vm1196, %v2267, %v1950
        %v2284 = vsel %vm1196, %v2268, %v1952
        %v2285 = vsel %vm1196, %v2269, %v1954
        %v2286 = vsel %vm1196, %v2270, %v1956
        %v2287 = vsel %vm1196, %v2271, %v1958
        %v2288 = vsel %vm1196, %v2272, %v1960
        %v2289 = vsel %vm1196, %v2273, %v1962
        %v2290 = vsel %vm1196, %v2274, %v1964
        %v2291 = vsel %vm1196, %v2275, %v1966
        %v2292 = vsel %vm1196, %v2276, %v1968
        %v2293 = vsel %vm1196, %v2277, %v1970
        %v2294 = vsel %vm1196, %v2278, %v1972
        %v2295 = vsel %vm1196, %v2279, %v1974
        %v2296 = vsel %vm1196, %v2280, %v1976
        %v2297 = vsel %vm1213, %v2281, %v2010
        %v2298 = vsel %vm1213, %v2282, %v2012
        %v2299 = vsel %vm1213, %v2283, %v2014
        %v2300 = vsel %vm1213, %v2284, %v2016
        %v2301 = vsel %vm1213, %v2285, %v2018
        %v2302 = vsel %vm1213, %v2286, %v2020
        %v2303 = vsel %vm1213, %v2287, %v2022
        %v2304 = vsel %vm1213, %v2288, %v2024
        %v2305 = vsel %vm1213, %v2289, %v2026
        %v2306 = vsel %vm1213, %v2290, %v2028
        %v2307 = vsel %vm1213, %v2291, %v2030
        %v2308 = vsel %vm1213, %v2292, %v2032
        %v2309 = vsel %vm1213, %v2293, %v2034
        %v2310 = vsel %vm1213, %v2294, %v2036
        %v2311 = vsel %vm1213, %v2295, %v2038
        %v2312 = vsel %vm1213, %v2296, %v2040
        %v2313 = vsel %vm1230, %v2297, %v2074
        %v2314 = vsel %vm1230, %v2298, %v2076
        %v2315 = vsel %vm1230, %v2299, %v2078
        %v2316 = vsel %vm1230, %v2300, %v2080
        %v2317 = vsel %vm1230, %v2301, %v2082
        %v2318 = vsel %vm1230, %v2302, %v2084
        %v2319 = vsel %vm1230, %v2303, %v2086
        %v2320 = vsel %vm1230, %v2304, %v2088
        %v2321 = vsel %vm1230, %v2305, %v2090
        %v2322 = vsel %vm1230, %v2306, %v2092
        %v2323 = vsel %vm1230, %v2307, %v2094
        %v2324 = vsel %vm1230, %v2308, %v2096
        %v2325 = vsel %vm1230, %v2309, %v2098
        %v2326 = vsel %vm1230, %v2310, %v2100
        %v2327 = vsel %vm1230, %v2311, %v2102
        %v2328 = vsel %vm1230, %v2312, %v2104
        %v2329 = vsel %vm1247, %v2313, %v2138
        %v2330 = vsel %vm1247, %v2314, %v2140
        %v2331 = vsel %vm1247, %v2315, %v2142
        %v2332 = vsel %vm1247, %v2316, %v2144
        %v2333 = vsel %vm1247, %v2317, %v2146
        %v2334 = vsel %vm1247, %v2318, %v2148
        %v2335 = vsel %vm1247, %v2319, %v2150
        %v2336 = vsel %vm1247, %v2320, %v2152
        %v2337 = vsel %vm1247, %v2321, %v2154
        %v2338 = vsel %vm1247, %v2322, %v2156
        %v2339 = vsel %vm1247, %v2323, %v2158
        %v2340 = vsel %vm1247, %v2324, %v2160
        %v2341 = vsel %vm1247, %v2325, %v2162
        %v2342 = vsel %vm1247, %v2326, %v2164
        %v2343 = vsel %vm1247, %v2327, %v2166
        %v2344 = vsel %vm1247, %v2328, %v2168
        %v2345 = vsel %vm1264, %v2329, %v2202
        %v2346 = vsel %vm1264, %v2330, %v2204
        %v2347 = vsel %vm1264, %v2331, %v2206
        %v2348 = vsel %vm1264, %v2332, %v2208
        %v2349 = vsel %vm1264, %v2333, %v2210
        %v2350 = vsel %vm1264, %v2334, %v2212
        %v2351 = vsel %vm1264, %v2335, %v2214
        %v2352 = vsel %vm1264, %v2336, %v2216
        %v2353 = vsel %vm1264, %v2337, %v2218
        %v2354 = vsel %vm1264, %v2338, %v2220
        %v2355 = vsel %vm1264, %v2339, %v2222
        %v2356 = vsel %vm1264, %v2340, %v2224
        %v2357 = vsel %vm1264, %v2341, %v2226
        %v2358 = vsel %vm1264, %v2342, %v2228
        %v2359 = vsel %vm1264, %v2343, %v2230
        %v2360 = vsel %vm1264, %v2344, %v2232
        %v2361 = vpack.c.bf16 %v2346, %v2345
        %v2362 = vpack.c.bf16 %v1786, %v1785
        %v2363 = vpack.c.bf16 %v2348, %v2347
        %v2364 = vpack.c.bf16 %v1788, %v1787
        %v2365 = vpack.c.bf16 %v2350, %v2349
        %v2366 = vpack.c.bf16 %v1790, %v1789
        %v2367 = vpack.c.bf16 %v2352, %v2351
        %v2368 = vpack.c.bf16 %v1792, %v1791
        %v2369 = vpack.c.bf16 %v2354, %v2353
        %v2370 = vpack.c.bf16 %v1794, %v1793
        %v2371 = vpack.c.bf16 %v2356, %v2355
        %v2372 = vpack.c.bf16 %v1796, %v1795
        %v2373 = vpack.c.bf16 %v2358, %v2357
        %v2374 = vpack.c.bf16 %v1798, %v1797
        %v2375 = vpack.c.bf16 %v2360, %v2359
        %v2376 = vpack.c.bf16 %v1800, %v1799
        %v2377 = vld [vmem:[#allocation10] sm:$0xf]
        %v2378 = vld [vmem:[#allocation10 + $0x4] sm:$0xf]
        %v2379 = vld [vmem:[#allocation10 + $0x8] sm:$0xf]
        %v2380 = vld [vmem:[#allocation10 + $0xc] sm:$0xf]
        %v2381 = vld [vmem:[#allocation10 + $0x10] sm:$0xf]
        %v2382 = vld [vmem:[#allocation10 + $0x14] sm:$0xf]
        %v2383 = vld [vmem:[#allocation10 + $0x18] sm:$0xf]
        %v2384 = vld [vmem:[#allocation10 + $0x1c] sm:$0xf]
        %v2385 = vld [vmem:[#allocation10 + $0x20] sm:$0xf]
        %v2386 = vld [vmem:[#allocation10 + $0x24] sm:$0xf]
        %v2387 = vld [vmem:[#allocation10 + $0x28] sm:$0xf]
        %v2388 = vld [vmem:[#allocation10 + $0x2c] sm:$0xf]
        %v2389 = vld [vmem:[#allocation10 + $0x30] sm:$0xf]
        %v2390 = vld [vmem:[#allocation10 + $0x34] sm:$0xf]
        %v2391 = vld [vmem:[#allocation10 + $0x38] sm:$0xf]
        %v2392 = vld [vmem:[#allocation10 + $0x3c] sm:$0xf]
        %v2393 = vld [vmem:[#allocation10 + $0x40] sm:$0xf]
        %v2394 = vld [vmem:[#allocation10 + $0x44] sm:$0xf]
        %v2395 = vld [vmem:[%s4] sm:$0x1]
        %v2397 = vlaneseq
        %v2398 = vshrl.u32 %v2397, 7
        %v2399 = vsub.s32 0, %v2398
        %v2400 = vrot.slane %v2395, %v2399
        %v2420 = vunpack.c.l.b16 %v2377
        %v2421 = vunpack.c.l.b16 %v2378
        %v2422 = vunpack.c.l.b16 %v2379
        %v2423 = vunpack.c.l.b16 %v2380
        %v2424 = vunpack.c.l.b16 %v2381
        %v2425 = vunpack.c.l.b16 %v2382
        %v2426 = vunpack.c.l.b16 %v2383
        %v2427 = vunpack.c.l.b16 %v2384
        %v2428 = vunpack.c.l.b16 %v2385
        %v2429 = vunpack.c.l.b16 %v2386
        %v2430 = vunpack.c.l.b16 %v2387
        %v2431 = vunpack.c.l.b16 %v2388
        %v2432 = vunpack.c.l.b16 %v2389
        %v2433 = vunpack.c.l.b16 %v2390
        %v2434 = vunpack.c.l.b16 %v2391
        %v2435 = vunpack.c.l.b16 %v2392
        %v2436 = vunpack.c.l.b16 %v2393
        %v2437 = vunpack.c.l.b16 %v2394
        %v2438 = vpack.c.b16 %v2421, %v2420
        %v2439 = vpack.c.b16 %v2423, %v2422
        %v2440 = vpack.c.b16 %v2425, %v2424
        %v2441 = vpack.c.b16 %v2427, %v2426
        %v2442 = vpack.c.b16 %v2429, %v2428
        %v2443 = vpack.c.b16 %v2431, %v2430
        %v2444 = vpack.c.b16 %v2433, %v2432
        %v2445 = vpack.c.b16 %v2435, %v2434
        %v2446 = vpack.c.b16 %v2437, %v2436
        %v2457 = vsel %vm504, %v2362, 0
        %v2460 = vsel %vm504, %v2364, 0
        %v2463 = vsel %vm504, %v2366, 0
        %v2466 = vsel %vm504, %v2368, 0
        %v2469 = vsel %vm504, %v2370, 0
        %v2472 = vsel %vm504, %v2372, 0
        %v2475 = vsel %vm504, %v2374, 0
        %v2478 = vsel %vm504, %v2376, 0
        %2480 = vmatprep.subr.bf16.mxu0 0
        %2481 = vmatpush1.bf16.msra.mxu0 %v2445
        %2482 = vmatprep.subr.bf16.mxu0 0
        %2483 = vmatpush1.bf16.msra.mxu0 %v2444
        %2484 = vmatprep.subr.bf16.mxu0 0
        %2485 = vmatpush1.bf16.msra.mxu0 %v2443
        %2486 = vmatprep.subr.bf16.mxu0 0
        %2487 = vmatpush1.bf16.msra.mxu0 %v2442
        %2488 = vmatprep.subr.bf16.mxu0 0
        %2489 = vmatpush1.bf16.msra.mxu0 %v2441
        %2490 = vmatprep.subr.bf16.mxu0 0
        %2491 = vmatpush1.bf16.msra.mxu0 %v2440
        %2492 = vmatprep.subr.bf16.mxu0 0
        %2493 = vmatpush1.bf16.msra.mxu0 %v2439
        %2494 = vmatprep.subr.bf16.mxu0 0
        %2495 = vmatpush1.bf16.msra.mxu0 %v2438
        %2496 = vmatprep.subr.bf16.mxu0 0
        %2497 = vmatpush2.bf16.msra.mxu0 0
        %2498 = vmatprep.subr.bf16.mxu0 0
        %2499 = vmatpush2.bf16.msra.mxu0 0
        %2500 = vmatprep.subr.bf16.mxu0 0
        %2501 = vmatpush2.bf16.msra.mxu0 0
        %2502 = vmatprep.subr.bf16.mxu0 0
        %2503 = vmatpush2.bf16.msra.mxu0 0
        %2504 = vmatprep.subr.bf16.mxu0 0
        %2505 = vmatpush2.bf16.msra.mxu0 0
        %2506 = vmatprep.subr.bf16.mxu0 0
        %2507 = vmatpush2.bf16.msra.mxu0 0
        %2508 = vmatprep.subr.bf16.mxu0 0
        %2509 = vmatpush2.bf16.msra.mxu0 0
        %2510 = vmatprep.subr.bf16.mxu0 0
        %2511 = vmatpush2.bf16.msra.mxu0 %v2446
        %2512 = vmatprep.mubr.bf16.mxu0 %v2457
        %2513 = vmatmul.mubr.bf16.gmra.mxu0 %v2361
        %v2514 = vpop.f32.mrf.mxu0
        %v2515 = vadd.f32 %v2400, %v2514
        %v2516 = vpop.f32.mrf.mxu0
        %v2517 = vpop.f32.mrf.mxu0
        %v2518 = vadd.f32 %v2400, %v2517
        %v2519 = vpop.f32.mrf.mxu0
        %2520 = vmatprep.mubr.bf16.mxu0 %v2460
        %2521 = vmatmul.mubr.bf16.gmra.mxu0 %v2363
        %v2522 = vpop.f32.mrf.mxu0
        %v2523 = vadd.f32 %v2400, %v2522
        %v2524 = vpop.f32.mrf.mxu0
        %v2525 = vpop.f32.mrf.mxu0
        %v2526 = vadd.f32 %v2400, %v2525
        %v2527 = vpop.f32.mrf.mxu0
        %2528 = vmatprep.mubr.bf16.mxu0 %v2463
        %2529 = vmatmul.mubr.bf16.gmra.mxu0 %v2365
        %v2530 = vpop.f32.mrf.mxu0
        %v2531 = vadd.f32 %v2400, %v2530
        %v2532 = vpop.f32.mrf.mxu0
        %v2533 = vpop.f32.mrf.mxu0
        %v2534 = vadd.f32 %v2400, %v2533
        %v2535 = vpop.f32.mrf.mxu0
        %2536 = vmatprep.mubr.bf16.mxu0 %v2466
        %2537 = vmatmul.mubr.bf16.gmra.mxu0 %v2367
        %v2538 = vpop.f32.mrf.mxu0
        %v2539 = vadd.f32 %v2400, %v2538
        %v2540 = vpop.f32.mrf.mxu0
        %v2541 = vpop.f32.mrf.mxu0
        %v2542 = vadd.f32 %v2400, %v2541
        %v2543 = vpop.f32.mrf.mxu0
        %2544 = vmatprep.mubr.bf16.mxu0 %v2469
        %2545 = vmatmul.mubr.bf16.gmra.mxu0 %v2369
        %v2546 = vpop.f32.mrf.mxu0
        %v2547 = vadd.f32 %v2400, %v2546
        %v2548 = vpop.f32.mrf.mxu0
        %v2549 = vpop.f32.mrf.mxu0
        %v2550 = vadd.f32 %v2400, %v2549
        %v2551 = vpop.f32.mrf.mxu0
        %2552 = vmatprep.mubr.bf16.mxu0 %v2472
        %2553 = vmatmul.mubr.bf16.gmra.mxu0 %v2371
        %v2554 = vpop.f32.mrf.mxu0
        %v2555 = vadd.f32 %v2400, %v2554
        %v2556 = vpop.f32.mrf.mxu0
        %v2557 = vpop.f32.mrf.mxu0
        %v2558 = vadd.f32 %v2400, %v2557
        %v2559 = vpop.f32.mrf.mxu0
        %2560 = vmatprep.mubr.bf16.mxu0 %v2475
        %2561 = vmatmul.mubr.bf16.gmra.mxu0 %v2373
        %v2562 = vpop.f32.mrf.mxu0
        %v2563 = vadd.f32 %v2400, %v2562
        %v2564 = vpop.f32.mrf.mxu0
        %v2565 = vpop.f32.mrf.mxu0
        %v2566 = vadd.f32 %v2400, %v2565
        %v2567 = vpop.f32.mrf.mxu0
        %2568 = vmatprep.mubr.bf16.mxu0 %v2478
        %2569 = vmatmul.mubr.bf16.gmra.mxu0 %v2375
        %v2570 = vpop.f32.mrf.mxu0
        %v2571 = vadd.f32 %v2400, %v2570
        %v2572 = vpop.f32.mrf.mxu0
        %v2573 = vpop.f32.mrf.mxu0
        %v2574 = vadd.f32 %v2400, %v2573
        %v2575 = vpop.f32.mrf.mxu0
        %2576 = vdwg.mxu0
        %v2577 = vadd.f32 %v2515, %v392
        %v2578 = vadd.f32 %v2518, %v393
        %v2579 = vadd.f32 %v2523, %v394
        %v2580 = vadd.f32 %v2526, %v395
        %v2581 = vadd.f32 %v2531, %v396
        %v2582 = vadd.f32 %v2534, %v397
        %v2583 = vadd.f32 %v2539, %v398
        %v2584 = vadd.f32 %v2542, %v399
        %v2585 = vadd.f32 %v2547, %v400
        %v2586 = vadd.f32 %v2550, %v401
        %v2587 = vadd.f32 %v2555, %v402
        %v2588 = vadd.f32 %v2558, %v403
        %v2589 = vadd.f32 %v2563, %v404
        %v2590 = vadd.f32 %v2566, %v405
        %v2591 = vadd.f32 %v2571, %v406
        %v2592 = vadd.f32 %v2574, %v407
        %2593 = vst.msk [vmem:[%s290] sm:$0xff] %vm504, %v2577
        %2594 = vst.msk [vmem:[%s290 + $0x8] sm:$0xff] %vm504, %v2578
        %2595 = vst.msk [vmem:[%s290 + $0x10] sm:$0xff] %vm504, %v2579
        %2596 = vst.msk [vmem:[%s290 + $0x18] sm:$0xff] %vm504, %v2580
        %2597 = vst.msk [vmem:[%s290 + $0x20] sm:$0xff] %vm504, %v2581
        %2598 = vst.msk [vmem:[%s290 + $0x28] sm:$0xff] %vm504, %v2582
        %2599 = vst.msk [vmem:[%s290 + $0x30] sm:$0xff] %vm504, %v2583
        %2600 = vst.msk [vmem:[%s290 + $0x38] sm:$0xff] %vm504, %v2584
        %2601 = vst.msk [vmem:[%s290 + $0x40] sm:$0xff] %vm504, %v2585
        %2602 = vst.msk [vmem:[%s290 + $0x48] sm:$0xff] %vm504, %v2586
        %2603 = vst.msk [vmem:[%s290 + $0x50] sm:$0xff] %vm504, %v2587
        %2604 = vst.msk [vmem:[%s290 + $0x58] sm:$0xff] %vm504, %v2588
        %2605 = vst.msk [vmem:[%s290 + $0x60] sm:$0xff] %vm504, %v2589
        %2606 = vst.msk [vmem:[%s290 + $0x68] sm:$0xff] %vm504, %v2590
        %2607 = vst.msk [vmem:[%s290 + $0x70] sm:$0xff] %vm504, %v2591
        %2608 = vst.msk [vmem:[%s290 + $0x78] sm:$0xff] %vm504, %v2592
        %s2609 = sand.u32 %s157, 1
        %s2610 = scalar_lea.sflag [#allocation7], %s2609
        %s2611 = sand.u32 %s157, 1
        %s2612 = smul.addr %s2611, 128
        %s2613 = scalar_lea.vmem [#allocation11], %s2612
        // Predicated region
        $region57: #{basic_block_forward.1} parent=39 // pred_check
          %p2614 = pneg %p167
        $region58: #{basic_block_forward.1} parent=39 // pred_check_branch
          %2616 = sbr.rel (%p2614) target = $region60
        $region59: #{basic_block_forward.1} parent=39 // pred_region
          %s2617 = smul.u32 2, %s27
          %s2619 = ssub.s32 2048, 2048
          %2620 = vsyncadd %s2610, %s2619
          %s2621 = smul.addr %s2617, 8
          %s2622 = smul.addr %s28, 16
          %s2623 = sadd.s32 %s2621, %s2622
          %s2624 = smul.addr %s2623, 128
          %s2625 = scalar_lea.hbm %s5, %s2624
          %s2626 = sshll.u32 %s2613, 4
          %s2627 = int_to_ptr.vmem [resolvable:$true] %s2626
          %2632 = dma.vmem_to_hbm [thread:$0]  %s2627, 2048, %s2625, %s2610, 128, 128, 8
        $region60: #{basic_block_forward.1} parent=39 // pred_fallthru
          _
      $region40: #{basic_block_forward.1} parent=5 // pred_fallthru
        _
      %p2633 = scmp.le.s32.totalorder 2, %s18
      // Predicated region
      $region61: #{basic_block_forward.1} parent=5 // pred_check
        %p2634 = pneg %p2633
      $region62: #{basic_block_forward.1} parent=5 // pred_check_branch
        %2636 = sbr.rel (%p2634) target = $region64
      $region63: #{basic_block_forward.1} parent=5 // pred_region
        %s2637 = ssub.s32 %s18, 2
        // Predicated region
        $region65: #{basic_block_forward.1} parent=63 // pred_check
          %p2638 = pneg %p173
        $region66: #{basic_block_forward.1} parent=63 // pred_check_branch
          %2640 = sbr.rel (%p2638) target = $region68
        $region67: #{basic_block_forward.1} parent=63 // pred_region
          %s2641 = sand.u32 %s158, 1
          %s2642 = scalar_lea.sflag [#allocation7], %s2641
          %s2643 = sand.u32 %s158, 1
          %s2644 = smul.addr %s2643, 128
          %s2645 = scalar_lea.vmem [#allocation11], %s2644
          %2646 = dma.done %s2642, 2048
        $region68: #{basic_block_forward.1} parent=63 // pred_fallthru
          _
      $region64: #{basic_block_forward.1} parent=5 // pred_fallthru
        _
    $region6: #{basic_block_forward.1} parent=1 // loop_footer
      %s22 = sadd.s32 1, %s18
    $region7: #{basic_block_forward.1} parent=1 // loop_footer_branch
      %17 = sbr.rel target = $region3
    $region8: #{basic_block_forward.1} parent=1 // loop_exit
      _
    %2647 = vsyncpa [#allocation6], 1
    %s2648 = scalar_lea.sflag [#allocation6], 1
    %2649 = vsyncpa %s2648, 1
    %2650 = vsyncpa [#allocation9], 1
    %2651 = vsyncpa [#allocation7], 1
    %s2652 = scalar_lea.sflag [#allocation7], 1
    %2653 = vsyncpa %s2652, 1

</llo_original>
